<compile_context>
chip_gen: v7x
topology: tpu7x:2x2x1
jax: 0.10.0
libtpu: 0.0.40
codegen_flags: <defaults>
</compile_context>

<pallas_src>
import numpy as np
import jax
import jax.numpy as jnp
from jax.experimental import pallas as pl
from jax.experimental.pallas import tpu as pltpu

HOP_LENGTH = 128
N_FFT = 512
N_FREQ = N_FFT // 2 + 1   # 257 onesided rfft bins (only used to build K on host)
TM = 256                  # frames (rows) per grid step; multiple of 8, MXU-friendly


# ----------------------------- Pallas kernel --------------------------------

def _roundtrip_kernel(frames_ref, k_ref, out_ref):
    # frames_ref: (TM, N_FFT) raw frames; k_ref: (N_FFT, N_FFT) composite
    # windowed-DFT round-trip operator (windows + all scales already folded in).
    # Pure MXU work, lane-dense 512-wide output.
    out_ref[...] = jnp.dot(frames_ref[...], k_ref[...],
                           preferred_element_type=jnp.float32)


def _roundtrip_matmul(frames, k_mat):
    m_pad = frames.shape[0]
    return pl.pallas_call(
        _roundtrip_kernel,
        out_shape=jax.ShapeDtypeStruct((m_pad, N_FFT), jnp.float32),
        grid=(m_pad // TM,),
        in_specs=[
            pl.BlockSpec((TM, N_FFT), lambda i: (i, 0)),
            # constant operand: index_map is constant so it is DMA'd only once;
            # (default double-buffering wastes ~1 MB which is negligible here).
            pl.BlockSpec((N_FFT, N_FFT), lambda i: (0, 0)),
        ],
        out_specs=pl.BlockSpec((TM, N_FFT), lambda i: (i, 0)),
        compiler_params=pltpu.CompilerParams(
            dimension_semantics=("parallel",)),
    )(frames, k_mat)


# --------------------------- parameter construction -------------------------

def build_params():
    """Build the composite per-frame operator K (float64 on host) and the window."""
    n = np.arange(N_FFT, dtype=np.float64)
    f = np.arange(N_FREQ, dtype=np.float64)
    # periodic Hann window (torch.hann_window default, periodic=True)
    win = 0.5 - 0.5 * np.cos(2.0 * np.pi * n / N_FFT)

    # forward onesided DFT basis; torch.stft(normalized=True) adds 1/sqrt(N)
    ang = 2.0 * np.pi * np.outer(n, f) / N_FFT              # (N_FFT, N_FREQ)
    cos_m = np.cos(ang)
    sin_m = -np.sin(ang)
    scale_fwd = 1.0 / np.sqrt(N_FFT)

    # inverse onesided DFT basis with conjugate-symmetry weights;
    # istft(normalized=True) multiplies by sqrt(N), full IDFT divides by N
    c = np.full(N_FREQ, 2.0)
    c[0] = 1.0
    c[-1] = 1.0
    ang2 = 2.0 * np.pi * np.outer(f, n) / N_FFT             # (N_FREQ, N_FFT)
    icos_m = (c[:, None] * np.cos(ang2)) * (np.sqrt(N_FFT) / N_FFT)
    isin_m = -(c[:, None] * np.sin(ang2)) * (np.sqrt(N_FFT) / N_FFT)

    # composite: analysis window -> fwd DFT -> inv DFT -> synthesis window
    a = cos_m @ icos_m + sin_m @ isin_m                      # (N_FFT, N_FFT)
    k_mat = (win[:, None] * a * win[None, :]) * scale_fwd
    return jnp.asarray(k_mat, jnp.float32), win


# ------------------------------- model forward -------------------------------

def example_signal_model(x, k_mat, win_np):
    """STFT (n_fft=512, hop=128, hann, normalized) followed by ISTFT. x: (B, L)."""
    B, L = x.shape
    pad = N_FFT // 2

    # --- framing (torch.stft center=True, pad_mode='reflect'); XLA glue ---
    x_pad = jnp.pad(x, ((0, 0), (pad, pad)), mode="reflect")
    T = 1 + (x_pad.shape[1] - N_FFT) // HOP_LENGTH
    idx = np.arange(T)[:, None] * HOP_LENGTH + np.arange(N_FFT)[None, :]
    frames = x_pad[:, idx].reshape(B * T, N_FFT)

    M = B * T
    M_pad = ((M + TM - 1) // TM) * TM
    frames = jnp.pad(frames, ((0, M_pad - M), (0, 0)))

    # --- fused STFT->ISTFT kernel: one 512x512 matmul per frame block ---
    frames_out = _roundtrip_matmul(frames, k_mat)[:M].reshape(B, T, N_FFT)

    # --- overlap-add (hop divides n_fft: 4 non-overlapping sub-chunks) ---
    # TODO(synk): overlap-add + envelope normalization remain XLA-side; an in-kernel
    # OLA epilogue (input_output_aliases accumulation) would save one HBM pass.
    full_len = N_FFT + (T - 1) * HOP_LENGTH
    ola = jnp.zeros((B, full_len), jnp.float32)
    for k in range(N_FFT // HOP_LENGTH):
        chunk = frames_out[:, :, k * HOP_LENGTH:(k + 1) * HOP_LENGTH].reshape(
            B, T * HOP_LENGTH)
        ola = ola.at[:, k * HOP_LENGTH:k * HOP_LENGTH + T * HOP_LENGTH].add(chunk)

    # --- squared-window envelope: reciprocal precomputed on host (multiply, not divide)
    env = np.zeros(full_len, np.float64)
    w2 = win_np * win_np
    for t in range(T):
        env[t * HOP_LENGTH:t * HOP_LENGTH + N_FFT] += w2
    out_len = (T - 1) * HOP_LENGTH                  # torch.istft default output length
    env_crop = env[pad:pad + out_len]
    inv_env = np.where(env_crop > 1e-11, 1.0 / np.maximum(env_crop, 1e-30), 0.0)
    inv_env = jnp.asarray(inv_env, jnp.float32)

    return ola[:, pad:pad + out_len] * inv_env[None, :]


# ----------------------------------- main ------------------------------------

if __name__ == "__main__":
    k_mat, win_np = build_params()

    key = jax.random.PRNGKey(0)
    B, L = 2, 1024                                   # small shapes; L multiple of hop
    x = jax.random.normal(key, (B, L), dtype=jnp.float32)

    fn = jax.jit(lambda xx: example_signal_model(xx, k_mat, win_np))
    y = jax.block_until_ready(fn(x))

    assert y.shape == (B, L), y.shape
    assert bool(jnp.all(jnp.isfinite(y)))
    # STFT -> ISTFT with matching params is an (almost) exact reconstruction.
    err = float(jnp.max(jnp.abs(y - x)))
    assert err < 1e-3, err
    print("KERNEL_OK")
</pallas_src>

<mosaic_0001>
module attributes {stable_mosaic.version = 11 : i64} {
  func.func @_roundtrip_kernel(%arg0: i32, %arg1: memref<256x512xf32, #tpu.memory_space<vmem>>, %arg2: memref<512x512xf32, #tpu.memory_space<vmem>>, %arg3: memref<256x512xf32, #tpu.memory_space<vmem>>) attributes {dimension_semantics = [#tpu.dimension_semantics<parallel>], iteration_bounds = array<i64: 1>, scalar_prefetch = 0 : i64, scratch_operands = 0 : i64, tpu.core_type = #tpu.core_type<tc>, window_params = [{transform_indices = @transform_0, window_bounds = array<i64: 256, 512>}, {pipeline_mode = #tpu.pipeline_mode<synchronous>, transform_indices = @transform_1, window_bounds = array<i64: 512, 512>}, {transform_indices = @transform_2, window_bounds = array<i64: 256, 512>}]} {
    %c0 = arith.constant 0 : index
    %c0_0 = arith.constant 0 : index
    %0 = vector.load %arg1[%c0, %c0_0] : memref<256x512xf32, #tpu.memory_space<vmem>>, vector<256x512xf32>
    %c0_1 = arith.constant 0 : index
    %c0_2 = arith.constant 0 : index
    %1 = vector.load %arg2[%c0_1, %c0_2] : memref<512x512xf32, #tpu.memory_space<vmem>>, vector<512x512xf32>
    %cst = arith.constant dense<0.000000e+00> : vector<256x512xf32>
    %2 = tpu.matmul %0, %1, %cst {dimension_numbers = #tpu.dot_dimension_numbers<[1], [0], [0], [1], [0, 0, 1, 1], [], []>} : vector<256x512xf32>, vector<512x512xf32>, vector<256x512xf32> -> vector<256x512xf32>
    %c0_3 = arith.constant 0 : index
    %c0_4 = arith.constant 0 : index
    %3 = vector.load %arg3[%c0_3, %c0_4] : memref<256x512xf32, #tpu.memory_space<vmem>>, vector<256x512xf32>
    tpu.vector_store %arg3[%c0_3, %c0_4], %2 {strides = array<i32>} : memref<256x512xf32, #tpu.memory_space<vmem>>, vector<256x512xf32>,
    return
  }
  func.func @transform_0(%arg0: i32) -> (i32, i32) {
    %c0_i32 = arith.constant 0 : i32
    %c0_i32_0 = arith.constant 0 : i32
    return %arg0, %c0_i32 : i32, i32
  }
  func.func @transform_1(%arg0: i32) -> (i32, i32) {
    %c0_i32 = arith.constant 0 : i32
    %c0_i32_0 = arith.constant 0 : i32
    %c0_i32_1 = arith.constant 0 : i32
    return %c0_i32, %c0_i32_0 : i32, i32
  }
  func.func @transform_2(%arg0: i32) -> (i32, i32) {
    %c0_i32 = arith.constant 0 : i32
    %c0_i32_0 = arith.constant 0 : i32
    return %arg0, %c0_i32 : i32, i32
  }
}

</mosaic_0001>

<llo_original>
// kernel: _lambda_.1
$region0: #{_lambda_.1}
  #allocation0 [shape = 'u32[]', space=smem, size = 0x4, offset = 0x4, fixed_abs, tag = 'smem constant byte address 0x4 - core index']
  #allocation1 [shape = 'u32[144,128]{1,0:T(1,128)}', space=vmem, size = 0x12000, scoped, tag = 'internal scratch']
  %s0 = inlined_call_operand.vmem [shape: f32[256,512], index: 0, kind: input, shape index: {}]
  %s1 = inlined_call_operand.vmem [shape: f32[512,512], index: 1, kind: input, shape index: {}]
  %s2 = inlined_call_operand.vmem [shape: f32[256,512], index: 2, kind: output, shape index: {}]
  %s3 = sld [smem:[#allocation0]]
  $region18: #{_lambda_.1} parent=0
    _
  %s5 = ssub.s32 1, %s3
  %s6 = scalar_select 0, %s5, %s3
  // Predicated region
  $region2: #{_lambda_.1} parent=0 // pred_check
    _
  $region3: #{_lambda_.1} parent=0 // pred_check_branch
    %8 = sbr.rel (0) target = $region5
  $region4: #{_lambda_.1} parent=0 // pred_region
    _
  $region5: #{_lambda_.1} parent=0 // pred_fallthru
    _
  // Predicated region
  $region6: #{_lambda_.1} parent=0 // pred_check
    _
  $region7: #{_lambda_.1} parent=0 // pred_check_branch
    %10 = sbr.rel (0) target = $region9
  $region8: #{_lambda_.1} parent=0 // pred_region
    _
  $region9: #{_lambda_.1} parent=0 // pred_fallthru
    _
  %v11 = vld [vmem:[%s0] sm:$0xff]
  %v12 = vld [vmem:[%s0 + $0x8] sm:$0xff]
  %v13 = vld [vmem:[%s0 + $0x10] sm:$0xff]
  %v14 = vld [vmem:[%s0 + $0x18] sm:$0xff]
  %v15 = vld [vmem:[%s0 + $0x20] sm:$0xff]
  %v16 = vld [vmem:[%s0 + $0x28] sm:$0xff]
  %v17 = vld [vmem:[%s0 + $0x30] sm:$0xff]
  %v18 = vld [vmem:[%s0 + $0x38] sm:$0xff]
  %v19 = vld [vmem:[%s0 + $0x40] sm:$0xff]
  %v20 = vld [vmem:[%s0 + $0x48] sm:$0xff]
  %v21 = vld [vmem:[%s0 + $0x50] sm:$0xff]
  %v22 = vld [vmem:[%s0 + $0x58] sm:$0xff]
  %v23 = vld [vmem:[%s0 + $0x60] sm:$0xff]
  %v24 = vld [vmem:[%s0 + $0x68] sm:$0xff]
  %v25 = vld [vmem:[%s0 + $0x70] sm:$0xff]
  %v26 = vld [vmem:[%s0 + $0x78] sm:$0xff]
  %v27 = vld [vmem:[%s0 + $0x80] sm:$0xff]
  %v28 = vld [vmem:[%s0 + $0x88] sm:$0xff]
  %v29 = vld [vmem:[%s0 + $0x90] sm:$0xff]
  %v30 = vld [vmem:[%s0 + $0x98] sm:$0xff]
  %v31 = vld [vmem:[%s0 + $0xa0] sm:$0xff]
  %v32 = vld [vmem:[%s0 + $0xa8] sm:$0xff]
  %v33 = vld [vmem:[%s0 + $0xb0] sm:$0xff]
  %v34 = vld [vmem:[%s0 + $0xb8] sm:$0xff]
  %v35 = vld [vmem:[%s0 + $0xc0] sm:$0xff]
  %v36 = vld [vmem:[%s0 + $0xc8] sm:$0xff]
  %v37 = vld [vmem:[%s0 + $0xd0] sm:$0xff]
  %v38 = vld [vmem:[%s0 + $0xd8] sm:$0xff]
  %v39 = vld [vmem:[%s0 + $0xe0] sm:$0xff]
  %v40 = vld [vmem:[%s0 + $0xe8] sm:$0xff]
  %v41 = vld [vmem:[%s0 + $0xf0] sm:$0xff]
  %v42 = vld [vmem:[%s0 + $0xf8] sm:$0xff]
  %v43 = vld [vmem:[%s0 + $0x100] sm:$0xff]
  %v44 = vld [vmem:[%s0 + $0x108] sm:$0xff]
  %v45 = vld [vmem:[%s0 + $0x110] sm:$0xff]
  %v46 = vld [vmem:[%s0 + $0x118] sm:$0xff]
  %v47 = vld [vmem:[%s0 + $0x120] sm:$0xff]
  %v48 = vld [vmem:[%s0 + $0x128] sm:$0xff]
  %v49 = vld [vmem:[%s0 + $0x130] sm:$0xff]
  %v50 = vld [vmem:[%s0 + $0x138] sm:$0xff]
  %v51 = vld [vmem:[%s0 + $0x140] sm:$0xff]
  %v52 = vld [vmem:[%s0 + $0x148] sm:$0xff]
  %v53 = vld [vmem:[%s0 + $0x150] sm:$0xff]
  %v54 = vld [vmem:[%s0 + $0x158] sm:$0xff]
  %v55 = vld [vmem:[%s0 + $0x160] sm:$0xff]
  %v56 = vld [vmem:[%s0 + $0x168] sm:$0xff]
  %v57 = vld [vmem:[%s0 + $0x170] sm:$0xff]
  %v58 = vld [vmem:[%s0 + $0x178] sm:$0xff]
  %v59 = vld [vmem:[%s0 + $0x180] sm:$0xff]
  %v60 = vld [vmem:[%s0 + $0x188] sm:$0xff]
  %v61 = vld [vmem:[%s0 + $0x190] sm:$0xff]
  %v62 = vld [vmem:[%s0 + $0x198] sm:$0xff]
  %v63 = vld [vmem:[%s0 + $0x1a0] sm:$0xff]
  %v64 = vld [vmem:[%s0 + $0x1a8] sm:$0xff]
  %v65 = vld [vmem:[%s0 + $0x1b0] sm:$0xff]
  %v66 = vld [vmem:[%s0 + $0x1b8] sm:$0xff]
  %v67 = vld [vmem:[%s0 + $0x1c0] sm:$0xff]
  %v68 = vld [vmem:[%s0 + $0x1c8] sm:$0xff]
  %v69 = vld [vmem:[%s0 + $0x1d0] sm:$0xff]
  %v70 = vld [vmem:[%s0 + $0x1d8] sm:$0xff]
  %v71 = vld [vmem:[%s0 + $0x1e0] sm:$0xff]
  %v72 = vld [vmem:[%s0 + $0x1e8] sm:$0xff]
  %v73 = vld [vmem:[%s0 + $0x1f0] sm:$0xff]
  %v74 = vld [vmem:[%s0 + $0x1f8] sm:$0xff]
  %v75 = vld [vmem:[%s0 + $0x200] sm:$0xff]
  %v76 = vld [vmem:[%s0 + $0x208] sm:$0xff]
  %v77 = vld [vmem:[%s0 + $0x210] sm:$0xff]
  %v78 = vld [vmem:[%s0 + $0x218] sm:$0xff]
  %v79 = vld [vmem:[%s0 + $0x220] sm:$0xff]
  %v80 = vld [vmem:[%s0 + $0x228] sm:$0xff]
  %v81 = vld [vmem:[%s0 + $0x230] sm:$0xff]
  %v82 = vld [vmem:[%s0 + $0x238] sm:$0xff]
  %v83 = vld [vmem:[%s0 + $0x240] sm:$0xff]
  %v84 = vld [vmem:[%s0 + $0x248] sm:$0xff]
  %v85 = vld [vmem:[%s0 + $0x250] sm:$0xff]
  %v86 = vld [vmem:[%s0 + $0x258] sm:$0xff]
  %v87 = vld [vmem:[%s0 + $0x260] sm:$0xff]
  %v88 = vld [vmem:[%s0 + $0x268] sm:$0xff]
  %v89 = vld [vmem:[%s0 + $0x270] sm:$0xff]
  %v90 = vld [vmem:[%s0 + $0x278] sm:$0xff]
  %v91 = vld [vmem:[%s0 + $0x280] sm:$0xff]
  %v92 = vld [vmem:[%s0 + $0x288] sm:$0xff]
  %v93 = vld [vmem:[%s0 + $0x290] sm:$0xff]
  %v94 = vld [vmem:[%s0 + $0x298] sm:$0xff]
  %v95 = vld [vmem:[%s0 + $0x2a0] sm:$0xff]
  %v96 = vld [vmem:[%s0 + $0x2a8] sm:$0xff]
  %v97 = vld [vmem:[%s0 + $0x2b0] sm:$0xff]
  %v98 = vld [vmem:[%s0 + $0x2b8] sm:$0xff]
  %v99 = vld [vmem:[%s0 + $0x2c0] sm:$0xff]
  %v100 = vld [vmem:[%s0 + $0x2c8] sm:$0xff]
  %v101 = vld [vmem:[%s0 + $0x2d0] sm:$0xff]
  %v102 = vld [vmem:[%s0 + $0x2d8] sm:$0xff]
  %v103 = vld [vmem:[%s0 + $0x2e0] sm:$0xff]
  %v104 = vld [vmem:[%s0 + $0x2e8] sm:$0xff]
  %v105 = vld [vmem:[%s0 + $0x2f0] sm:$0xff]
  %v106 = vld [vmem:[%s0 + $0x2f8] sm:$0xff]
  %v107 = vld [vmem:[%s0 + $0x300] sm:$0xff]
  %v108 = vld [vmem:[%s0 + $0x308] sm:$0xff]
  %v109 = vld [vmem:[%s0 + $0x310] sm:$0xff]
  %v110 = vld [vmem:[%s0 + $0x318] sm:$0xff]
  %v111 = vld [vmem:[%s0 + $0x320] sm:$0xff]
  %v112 = vld [vmem:[%s0 + $0x328] sm:$0xff]
  %v113 = vld [vmem:[%s0 + $0x330] sm:$0xff]
  %v114 = vld [vmem:[%s0 + $0x338] sm:$0xff]
  %v115 = vld [vmem:[%s0 + $0x340] sm:$0xff]
  %v116 = vld [vmem:[%s0 + $0x348] sm:$0xff]
  %v117 = vld [vmem:[%s0 + $0x350] sm:$0xff]
  %v118 = vld [vmem:[%s0 + $0x358] sm:$0xff]
  %v119 = vld [vmem:[%s0 + $0x360] sm:$0xff]
  %v120 = vld [vmem:[%s0 + $0x368] sm:$0xff]
  %v121 = vld [vmem:[%s0 + $0x370] sm:$0xff]
  %v122 = vld [vmem:[%s0 + $0x378] sm:$0xff]
  %v123 = vld [vmem:[%s0 + $0x380] sm:$0xff]
  %v124 = vld [vmem:[%s0 + $0x388] sm:$0xff]
  %v125 = vld [vmem:[%s0 + $0x390] sm:$0xff]
  %v126 = vld [vmem:[%s0 + $0x398] sm:$0xff]
  %v127 = vld [vmem:[%s0 + $0x3a0] sm:$0xff]
  %v128 = vld [vmem:[%s0 + $0x3a8] sm:$0xff]
  %v129 = vld [vmem:[%s0 + $0x3b0] sm:$0xff]
  %v130 = vld [vmem:[%s0 + $0x3b8] sm:$0xff]
  %v131 = vld [vmem:[%s0 + $0x3c0] sm:$0xff]
  %v132 = vld [vmem:[%s0 + $0x3c8] sm:$0xff]
  %v133 = vld [vmem:[%s0 + $0x3d0] sm:$0xff]
  %v134 = vld [vmem:[%s0 + $0x3d8] sm:$0xff]
  %v135 = vld [vmem:[%s0 + $0x3e0] sm:$0xff]
  %v136 = vld [vmem:[%s0 + $0x3e8] sm:$0xff]
  %v137 = vld [vmem:[%s0 + $0x3f0] sm:$0xff]
  %v138 = vld [vmem:[%s0 + $0x3f8] sm:$0xff]
  %v139 = vld [vmem:[%s1] sm:$0xff]
  %v140 = vld [vmem:[%s1 + $0x8] sm:$0xff]
  %v141 = vld [vmem:[%s1 + $0x10] sm:$0xff]
  %v142 = vld [vmem:[%s1 + $0x18] sm:$0xff]
  %v143 = vld [vmem:[%s1 + $0x20] sm:$0xff]
  %v144 = vld [vmem:[%s1 + $0x28] sm:$0xff]
  %v145 = vld [vmem:[%s1 + $0x30] sm:$0xff]
  %v146 = vld [vmem:[%s1 + $0x38] sm:$0xff]
  %v147 = vld [vmem:[%s1 + $0x40] sm:$0xff]
  %v148 = vld [vmem:[%s1 + $0x48] sm:$0xff]
  %v149 = vld [vmem:[%s1 + $0x50] sm:$0xff]
  %v150 = vld [vmem:[%s1 + $0x58] sm:$0xff]
  %v151 = vld [vmem:[%s1 + $0x60] sm:$0xff]
  %v152 = vld [vmem:[%s1 + $0x68] sm:$0xff]
  %v153 = vld [vmem:[%s1 + $0x70] sm:$0xff]
  %v154 = vld [vmem:[%s1 + $0x78] sm:$0xff]
  %v155 = vld [vmem:[%s1 + $0x80] sm:$0xff]
  %v156 = vld [vmem:[%s1 + $0x88] sm:$0xff]
  %v157 = vld [vmem:[%s1 + $0x90] sm:$0xff]
  %v158 = vld [vmem:[%s1 + $0x98] sm:$0xff]
  %v159 = vld [vmem:[%s1 + $0xa0] sm:$0xff]
  %v160 = vld [vmem:[%s1 + $0xa8] sm:$0xff]
  %v161 = vld [vmem:[%s1 + $0xb0] sm:$0xff]
  %v162 = vld [vmem:[%s1 + $0xb8] sm:$0xff]
  %v163 = vld [vmem:[%s1 + $0xc0] sm:$0xff]
  %v164 = vld [vmem:[%s1 + $0xc8] sm:$0xff]
  %v165 = vld [vmem:[%s1 + $0xd0] sm:$0xff]
  %v166 = vld [vmem:[%s1 + $0xd8] sm:$0xff]
  %v167 = vld [vmem:[%s1 + $0xe0] sm:$0xff]
  %v168 = vld [vmem:[%s1 + $0xe8] sm:$0xff]
  %v169 = vld [vmem:[%s1 + $0xf0] sm:$0xff]
  %v170 = vld [vmem:[%s1 + $0xf8] sm:$0xff]
  %v171 = vld [vmem:[%s1 + $0x100] sm:$0xff]
  %v172 = vld [vmem:[%s1 + $0x108] sm:$0xff]
  %v173 = vld [vmem:[%s1 + $0x110] sm:$0xff]
  %v174 = vld [vmem:[%s1 + $0x118] sm:$0xff]
  %v175 = vld [vmem:[%s1 + $0x120] sm:$0xff]
  %v176 = vld [vmem:[%s1 + $0x128] sm:$0xff]
  %v177 = vld [vmem:[%s1 + $0x130] sm:$0xff]
  %v178 = vld [vmem:[%s1 + $0x138] sm:$0xff]
  %v179 = vld [vmem:[%s1 + $0x140] sm:$0xff]
  %v180 = vld [vmem:[%s1 + $0x148] sm:$0xff]
  %v181 = vld [vmem:[%s1 + $0x150] sm:$0xff]
  %v182 = vld [vmem:[%s1 + $0x158] sm:$0xff]
  %v183 = vld [vmem:[%s1 + $0x160] sm:$0xff]
  %v184 = vld [vmem:[%s1 + $0x168] sm:$0xff]
  %v185 = vld [vmem:[%s1 + $0x170] sm:$0xff]
  %v186 = vld [vmem:[%s1 + $0x178] sm:$0xff]
  %v187 = vld [vmem:[%s1 + $0x180] sm:$0xff]
  %v188 = vld [vmem:[%s1 + $0x188] sm:$0xff]
  %v189 = vld [vmem:[%s1 + $0x190] sm:$0xff]
  %v190 = vld [vmem:[%s1 + $0x198] sm:$0xff]
  %v191 = vld [vmem:[%s1 + $0x1a0] sm:$0xff]
  %v192 = vld [vmem:[%s1 + $0x1a8] sm:$0xff]
  %v193 = vld [vmem:[%s1 + $0x1b0] sm:$0xff]
  %v194 = vld [vmem:[%s1 + $0x1b8] sm:$0xff]
  %v195 = vld [vmem:[%s1 + $0x1c0] sm:$0xff]
  %v196 = vld [vmem:[%s1 + $0x1c8] sm:$0xff]
  %v197 = vld [vmem:[%s1 + $0x1d0] sm:$0xff]
  %v198 = vld [vmem:[%s1 + $0x1d8] sm:$0xff]
  %v199 = vld [vmem:[%s1 + $0x1e0] sm:$0xff]
  %v200 = vld [vmem:[%s1 + $0x1e8] sm:$0xff]
  %v201 = vld [vmem:[%s1 + $0x1f0] sm:$0xff]
  %v202 = vld [vmem:[%s1 + $0x1f8] sm:$0xff]
  %v203 = vld [vmem:[%s1 + $0x200] sm:$0xff]
  %v204 = vld [vmem:[%s1 + $0x208] sm:$0xff]
  %v205 = vld [vmem:[%s1 + $0x210] sm:$0xff]
  %v206 = vld [vmem:[%s1 + $0x218] sm:$0xff]
  %v207 = vld [vmem:[%s1 + $0x220] sm:$0xff]
  %v208 = vld [vmem:[%s1 + $0x228] sm:$0xff]
  %v209 = vld [vmem:[%s1 + $0x230] sm:$0xff]
  %v210 = vld [vmem:[%s1 + $0x238] sm:$0xff]
  %v211 = vld [vmem:[%s1 + $0x240] sm:$0xff]
  %v212 = vld [vmem:[%s1 + $0x248] sm:$0xff]
  %v213 = vld [vmem:[%s1 + $0x250] sm:$0xff]
  %v214 = vld [vmem:[%s1 + $0x258] sm:$0xff]
  %v215 = vld [vmem:[%s1 + $0x260] sm:$0xff]
  %v216 = vld [vmem:[%s1 + $0x268] sm:$0xff]
  %v217 = vld [vmem:[%s1 + $0x270] sm:$0xff]
  %v218 = vld [vmem:[%s1 + $0x278] sm:$0xff]
  %v219 = vld [vmem:[%s1 + $0x280] sm:$0xff]
  %v220 = vld [vmem:[%s1 + $0x288] sm:$0xff]
  %v221 = vld [vmem:[%s1 + $0x290] sm:$0xff]
  %v222 = vld [vmem:[%s1 + $0x298] sm:$0xff]
  %v223 = vld [vmem:[%s1 + $0x2a0] sm:$0xff]
  %v224 = vld [vmem:[%s1 + $0x2a8] sm:$0xff]
  %v225 = vld [vmem:[%s1 + $0x2b0] sm:$0xff]
  %v226 = vld [vmem:[%s1 + $0x2b8] sm:$0xff]
  %v227 = vld [vmem:[%s1 + $0x2c0] sm:$0xff]
  %v228 = vld [vmem:[%s1 + $0x2c8] sm:$0xff]
  %v229 = vld [vmem:[%s1 + $0x2d0] sm:$0xff]
  %v230 = vld [vmem:[%s1 + $0x2d8] sm:$0xff]
  %v231 = vld [vmem:[%s1 + $0x2e0] sm:$0xff]
  %v232 = vld [vmem:[%s1 + $0x2e8] sm:$0xff]
  %v233 = vld [vmem:[%s1 + $0x2f0] sm:$0xff]
  %v234 = vld [vmem:[%s1 + $0x2f8] sm:$0xff]
  %v235 = vld [vmem:[%s1 + $0x300] sm:$0xff]
  %v236 = vld [vmem:[%s1 + $0x308] sm:$0xff]
  %v237 = vld [vmem:[%s1 + $0x310] sm:$0xff]
  %v238 = vld [vmem:[%s1 + $0x318] sm:$0xff]
  %v239 = vld [vmem:[%s1 + $0x320] sm:$0xff]
  %v240 = vld [vmem:[%s1 + $0x328] sm:$0xff]
  %v241 = vld [vmem:[%s1 + $0x330] sm:$0xff]
  %v242 = vld [vmem:[%s1 + $0x338] sm:$0xff]
  %v243 = vld [vmem:[%s1 + $0x340] sm:$0xff]
  %v244 = vld [vmem:[%s1 + $0x348] sm:$0xff]
  %v245 = vld [vmem:[%s1 + $0x350] sm:$0xff]
  %v246 = vld [vmem:[%s1 + $0x358] sm:$0xff]
  %v247 = vld [vmem:[%s1 + $0x360] sm:$0xff]
  %v248 = vld [vmem:[%s1 + $0x368] sm:$0xff]
  %v249 = vld [vmem:[%s1 + $0x370] sm:$0xff]
  %v250 = vld [vmem:[%s1 + $0x378] sm:$0xff]
  %v251 = vld [vmem:[%s1 + $0x380] sm:$0xff]
  %v252 = vld [vmem:[%s1 + $0x388] sm:$0xff]
  %v253 = vld [vmem:[%s1 + $0x390] sm:$0xff]
  %v254 = vld [vmem:[%s1 + $0x398] sm:$0xff]
  %v255 = vld [vmem:[%s1 + $0x3a0] sm:$0xff]
  %v256 = vld [vmem:[%s1 + $0x3a8] sm:$0xff]
  %v257 = vld [vmem:[%s1 + $0x3b0] sm:$0xff]
  %v258 = vld [vmem:[%s1 + $0x3b8] sm:$0xff]
  %v259 = vld [vmem:[%s1 + $0x3c0] sm:$0xff]
  %v260 = vld [vmem:[%s1 + $0x3c8] sm:$0xff]
  %v261 = vld [vmem:[%s1 + $0x3d0] sm:$0xff]
  %v262 = vld [vmem:[%s1 + $0x3d8] sm:$0xff]
  %v263 = vld [vmem:[%s1 + $0x3e0] sm:$0xff]
  %v264 = vld [vmem:[%s1 + $0x3e8] sm:$0xff]
  %v265 = vld [vmem:[%s1 + $0x3f0] sm:$0xff]
  %v266 = vld [vmem:[%s1 + $0x3f8] sm:$0xff]
  %v267 = vld [vmem:[%s1 + $0x400] sm:$0xff]
  %v268 = vld [vmem:[%s1 + $0x408] sm:$0xff]
  %v269 = vld [vmem:[%s1 + $0x410] sm:$0xff]
  %v270 = vld [vmem:[%s1 + $0x418] sm:$0xff]
  %v271 = vld [vmem:[%s1 + $0x420] sm:$0xff]
  %v272 = vld [vmem:[%s1 + $0x428] sm:$0xff]
  %v273 = vld [vmem:[%s1 + $0x430] sm:$0xff]
  %v274 = vld [vmem:[%s1 + $0x438] sm:$0xff]
  %v275 = vld [vmem:[%s1 + $0x440] sm:$0xff]
  %v276 = vld [vmem:[%s1 + $0x448] sm:$0xff]
  %v277 = vld [vmem:[%s1 + $0x450] sm:$0xff]
  %v278 = vld [vmem:[%s1 + $0x458] sm:$0xff]
  %v279 = vld [vmem:[%s1 + $0x460] sm:$0xff]
  %v280 = vld [vmem:[%s1 + $0x468] sm:$0xff]
  %v281 = vld [vmem:[%s1 + $0x470] sm:$0xff]
  %v282 = vld [vmem:[%s1 + $0x478] sm:$0xff]
  %v283 = vld [vmem:[%s1 + $0x480] sm:$0xff]
  %v284 = vld [vmem:[%s1 + $0x488] sm:$0xff]
  %v285 = vld [vmem:[%s1 + $0x490] sm:$0xff]
  %v286 = vld [vmem:[%s1 + $0x498] sm:$0xff]
  %v287 = vld [vmem:[%s1 + $0x4a0] sm:$0xff]
  %v288 = vld [vmem:[%s1 + $0x4a8] sm:$0xff]
  %v289 = vld [vmem:[%s1 + $0x4b0] sm:$0xff]
  %v290 = vld [vmem:[%s1 + $0x4b8] sm:$0xff]
  %v291 = vld [vmem:[%s1 + $0x4c0] sm:$0xff]
  %v292 = vld [vmem:[%s1 + $0x4c8] sm:$0xff]
  %v293 = vld [vmem:[%s1 + $0x4d0] sm:$0xff]
  %v294 = vld [vmem:[%s1 + $0x4d8] sm:$0xff]
  %v295 = vld [vmem:[%s1 + $0x4e0] sm:$0xff]
  %v296 = vld [vmem:[%s1 + $0x4e8] sm:$0xff]
  %v297 = vld [vmem:[%s1 + $0x4f0] sm:$0xff]
  %v298 = vld [vmem:[%s1 + $0x4f8] sm:$0xff]
  %v299 = vld [vmem:[%s1 + $0x500] sm:$0xff]
  %v300 = vld [vmem:[%s1 + $0x508] sm:$0xff]
  %v301 = vld [vmem:[%s1 + $0x510] sm:$0xff]
  %v302 = vld [vmem:[%s1 + $0x518] sm:$0xff]
  %v303 = vld [vmem:[%s1 + $0x520] sm:$0xff]
  %v304 = vld [vmem:[%s1 + $0x528] sm:$0xff]
  %v305 = vld [vmem:[%s1 + $0x530] sm:$0xff]
  %v306 = vld [vmem:[%s1 + $0x538] sm:$0xff]
  %v307 = vld [vmem:[%s1 + $0x540] sm:$0xff]
  %v308 = vld [vmem:[%s1 + $0x548] sm:$0xff]
  %v309 = vld [vmem:[%s1 + $0x550] sm:$0xff]
  %v310 = vld [vmem:[%s1 + $0x558] sm:$0xff]
  %v311 = vld [vmem:[%s1 + $0x560] sm:$0xff]
  %v312 = vld [vmem:[%s1 + $0x568] sm:$0xff]
  %v313 = vld [vmem:[%s1 + $0x570] sm:$0xff]
  %v314 = vld [vmem:[%s1 + $0x578] sm:$0xff]
  %v315 = vld [vmem:[%s1 + $0x580] sm:$0xff]
  %v316 = vld [vmem:[%s1 + $0x588] sm:$0xff]
  %v317 = vld [vmem:[%s1 + $0x590] sm:$0xff]
  %v318 = vld [vmem:[%s1 + $0x598] sm:$0xff]
  %v319 = vld [vmem:[%s1 + $0x5a0] sm:$0xff]
  %v320 = vld [vmem:[%s1 + $0x5a8] sm:$0xff]
  %v321 = vld [vmem:[%s1 + $0x5b0] sm:$0xff]
  %v322 = vld [vmem:[%s1 + $0x5b8] sm:$0xff]
  %v323 = vld [vmem:[%s1 + $0x5c0] sm:$0xff]
  %v324 = vld [vmem:[%s1 + $0x5c8] sm:$0xff]
  %v325 = vld [vmem:[%s1 + $0x5d0] sm:$0xff]
  %v326 = vld [vmem:[%s1 + $0x5d8] sm:$0xff]
  %v327 = vld [vmem:[%s1 + $0x5e0] sm:$0xff]
  %v328 = vld [vmem:[%s1 + $0x5e8] sm:$0xff]
  %v329 = vld [vmem:[%s1 + $0x5f0] sm:$0xff]
  %v330 = vld [vmem:[%s1 + $0x5f8] sm:$0xff]
  %v331 = vld [vmem:[%s1 + $0x600] sm:$0xff]
  %v332 = vld [vmem:[%s1 + $0x608] sm:$0xff]
  %v333 = vld [vmem:[%s1 + $0x610] sm:$0xff]
  %v334 = vld [vmem:[%s1 + $0x618] sm:$0xff]
  %v335 = vld [vmem:[%s1 + $0x620] sm:$0xff]
  %v336 = vld [vmem:[%s1 + $0x628] sm:$0xff]
  %v337 = vld [vmem:[%s1 + $0x630] sm:$0xff]
  %v338 = vld [vmem:[%s1 + $0x638] sm:$0xff]
  %v339 = vld [vmem:[%s1 + $0x640] sm:$0xff]
  %v340 = vld [vmem:[%s1 + $0x648] sm:$0xff]
  %v341 = vld [vmem:[%s1 + $0x650] sm:$0xff]
  %v342 = vld [vmem:[%s1 + $0x658] sm:$0xff]
  %v343 = vld [vmem:[%s1 + $0x660] sm:$0xff]
  %v344 = vld [vmem:[%s1 + $0x668] sm:$0xff]
  %v345 = vld [vmem:[%s1 + $0x670] sm:$0xff]
  %v346 = vld [vmem:[%s1 + $0x678] sm:$0xff]
  %v347 = vld [vmem:[%s1 + $0x680] sm:$0xff]
  %v348 = vld [vmem:[%s1 + $0x688] sm:$0xff]
  %v349 = vld [vmem:[%s1 + $0x690] sm:$0xff]
  %v350 = vld [vmem:[%s1 + $0x698] sm:$0xff]
  %v351 = vld [vmem:[%s1 + $0x6a0] sm:$0xff]
  %v352 = vld [vmem:[%s1 + $0x6a8] sm:$0xff]
  %v353 = vld [vmem:[%s1 + $0x6b0] sm:$0xff]
  %v354 = vld [vmem:[%s1 + $0x6b8] sm:$0xff]
  %v355 = vld [vmem:[%s1 + $0x6c0] sm:$0xff]
  %v356 = vld [vmem:[%s1 + $0x6c8] sm:$0xff]
  %v357 = vld [vmem:[%s1 + $0x6d0] sm:$0xff]
  %v358 = vld [vmem:[%s1 + $0x6d8] sm:$0xff]
  %v359 = vld [vmem:[%s1 + $0x6e0] sm:$0xff]
  %v360 = vld [vmem:[%s1 + $0x6e8] sm:$0xff]
  %v361 = vld [vmem:[%s1 + $0x6f0] sm:$0xff]
  %v362 = vld [vmem:[%s1 + $0x6f8] sm:$0xff]
  %v363 = vld [vmem:[%s1 + $0x700] sm:$0xff]
  %v364 = vld [vmem:[%s1 + $0x708] sm:$0xff]
  %v365 = vld [vmem:[%s1 + $0x710] sm:$0xff]
  %v366 = vld [vmem:[%s1 + $0x718] sm:$0xff]
  %v367 = vld [vmem:[%s1 + $0x720] sm:$0xff]
  %v368 = vld [vmem:[%s1 + $0x728] sm:$0xff]
  %v369 = vld [vmem:[%s1 + $0x730] sm:$0xff]
  %v370 = vld [vmem:[%s1 + $0x738] sm:$0xff]
  %v371 = vld [vmem:[%s1 + $0x740] sm:$0xff]
  %v372 = vld [vmem:[%s1 + $0x748] sm:$0xff]
  %v373 = vld [vmem:[%s1 + $0x750] sm:$0xff]
  %v374 = vld [vmem:[%s1 + $0x758] sm:$0xff]
  %v375 = vld [vmem:[%s1 + $0x760] sm:$0xff]
  %v376 = vld [vmem:[%s1 + $0x768] sm:$0xff]
  %v377 = vld [vmem:[%s1 + $0x770] sm:$0xff]
  %v378 = vld [vmem:[%s1 + $0x778] sm:$0xff]
  %v379 = vld [vmem:[%s1 + $0x780] sm:$0xff]
  %v380 = vld [vmem:[%s1 + $0x788] sm:$0xff]
  %v381 = vld [vmem:[%s1 + $0x790] sm:$0xff]
  %v382 = vld [vmem:[%s1 + $0x798] sm:$0xff]
  %v383 = vld [vmem:[%s1 + $0x7a0] sm:$0xff]
  %v384 = vld [vmem:[%s1 + $0x7a8] sm:$0xff]
  %v385 = vld [vmem:[%s1 + $0x7b0] sm:$0xff]
  %v386 = vld [vmem:[%s1 + $0x7b8] sm:$0xff]
  %v387 = vld [vmem:[%s1 + $0x7c0] sm:$0xff]
  %v388 = vld [vmem:[%s1 + $0x7c8] sm:$0xff]
  %v389 = vld [vmem:[%s1 + $0x7d0] sm:$0xff]
  %v390 = vld [vmem:[%s1 + $0x7d8] sm:$0xff]
  %v391 = vld [vmem:[%s1 + $0x7e0] sm:$0xff]
  %v392 = vld [vmem:[%s1 + $0x7e8] sm:$0xff]
  %v393 = vld [vmem:[%s1 + $0x7f0] sm:$0xff]
  %v394 = vld [vmem:[%s1 + $0x7f8] sm:$0xff]
  %395 = vmatprep.subr.mxu0 %v140
  %396 = vmatpush1.msra.mxu0 %v139
  %397 = vmatprep.subr.mxu0 %v144
  %398 = vmatpush1.msra.mxu0 %v143
  %399 = vmatprep.subr.mxu0 %v148
  %400 = vmatpush1.msra.mxu0 %v147
  %401 = vmatprep.subr.mxu0 %v152
  %402 = vmatpush1.msra.mxu0 %v151
  %403 = vmatprep.subr.mxu0 %v156
  %404 = vmatpush1.msra.mxu0 %v155
  %405 = vmatprep.subr.mxu0 %v160
  %406 = vmatpush1.msra.mxu0 %v159
  %407 = vmatprep.subr.mxu0 %v164
  %408 = vmatpush1.msra.mxu0 %v163
  %409 = vmatprep.subr.mxu0 %v168
  %410 = vmatpush1.msra.mxu0 %v167
  %411 = vmatprep.subr.mxu0 %v172
  %412 = vmatpush1.msra.mxu0 %v171
  %413 = vmatprep.subr.mxu0 %v176
  %414 = vmatpush1.msra.mxu0 %v175
  %415 = vmatprep.subr.mxu0 %v180
  %416 = vmatpush1.msra.mxu0 %v179
  %417 = vmatprep.subr.mxu0 %v184
  %418 = vmatpush1.msra.mxu0 %v183
  %419 = vmatprep.subr.mxu0 %v188
  %420 = vmatpush1.msra.mxu0 %v187
  %421 = vmatprep.subr.mxu0 %v192
  %422 = vmatpush1.msra.mxu0 %v191
  %423 = vmatprep.subr.mxu0 %v196
  %424 = vmatpush1.msra.mxu0 %v195
  %425 = vmatprep.subr.mxu0 %v200
  %426 = vmatpush1.msra.mxu0 %v199
  %427 = vmatprep.subr.mxu0 %v204
  %428 = vmatpush1.msra.mxu0 %v203
  %429 = vmatprep.subr.mxu0 %v208
  %430 = vmatpush1.msra.mxu0 %v207
  %431 = vmatprep.subr.mxu0 %v212
  %432 = vmatpush1.msra.mxu0 %v211
  %433 = vmatprep.subr.mxu0 %v216
  %434 = vmatpush1.msra.mxu0 %v215
  %435 = vmatprep.subr.mxu0 %v220
  %436 = vmatpush1.msra.mxu0 %v219
  %437 = vmatprep.subr.mxu0 %v224
  %438 = vmatpush1.msra.mxu0 %v223
  %439 = vmatprep.subr.mxu0 %v228
  %440 = vmatpush1.msra.mxu0 %v227
  %441 = vmatprep.subr.mxu0 %v232
  %442 = vmatpush1.msra.mxu0 %v231
  %443 = vmatprep.subr.mxu0 %v236
  %444 = vmatpush1.msra.mxu0 %v235
  %445 = vmatprep.subr.mxu0 %v240
  %446 = vmatpush1.msra.mxu0 %v239
  %447 = vmatprep.subr.mxu0 %v244
  %448 = vmatpush1.msra.mxu0 %v243
  %449 = vmatprep.subr.mxu0 %v248
  %450 = vmatpush1.msra.mxu0 %v247
  %451 = vmatprep.subr.mxu0 %v252
  %452 = vmatpush1.msra.mxu0 %v251
  %453 = vmatprep.subr.mxu0 %v256
  %454 = vmatpush1.msra.mxu0 %v255
  %455 = vmatprep.subr.mxu0 %v260
  %456 = vmatpush1.msra.mxu0 %v259
  %457 = vmatprep.subr.mxu0 %v264
  %458 = vmatpush1.msra.mxu0 %v263
  %459 = vmatprep.mubr.f32.mxu0 %v12
  %460 = vmatmul.mubr.f32.gmra.mrb[0].mxu0 %v11
  %v461 = vpop.f32.mrb[0].mxu0
  %v462 = vadd.f32 0.0, %v461
  %v463 = vpop.f32.mrb[0].mxu0
  %v464 = vadd.f32 0.0, %v463
  %465 = vmatprep.mubr.f32.mxu0 %v16
  %466 = vmatmul.mubr.f32.gmra.mrb[0].mxu0 %v15
  %v467 = vpop.f32.mrb[0].mxu0
  %v468 = vadd.f32 0.0, %v467
  %v469 = vpop.f32.mrb[0].mxu0
  %v470 = vadd.f32 0.0, %v469
  %471 = vmatprep.mubr.f32.mxu0 %v20
  %472 = vmatmul.mubr.f32.gmra.mrb[0].mxu0 %v19
  %v473 = vpop.f32.mrb[0].mxu0
  %v474 = vadd.f32 0.0, %v473
  %v475 = vpop.f32.mrb[0].mxu0
  %v476 = vadd.f32 0.0, %v475
  %477 = vmatprep.mubr.f32.mxu0 %v24
  %478 = vmatmul.mubr.f32.gmra.mrb[0].mxu0 %v23
  %v479 = vpop.f32.mrb[0].mxu0
  %v480 = vadd.f32 0.0, %v479
  %v481 = vpop.f32.mrb[0].mxu0
  %v482 = vadd.f32 0.0, %v481
  %483 = vmatprep.mubr.f32.mxu0 %v28
  %484 = vmatmul.mubr.f32.gmra.mrb[0].mxu0 %v27
  %v485 = vpop.f32.mrb[0].mxu0
  %v486 = vadd.f32 0.0, %v485
  %v487 = vpop.f32.mrb[0].mxu0
  %v488 = vadd.f32 0.0, %v487
  %489 = vmatprep.mubr.f32.mxu0 %v32
  %490 = vmatmul.mubr.f32.gmra.mrb[0].mxu0 %v31
  %v491 = vpop.f32.mrb[0].mxu0
  %v492 = vadd.f32 0.0, %v491
  %v493 = vpop.f32.mrb[0].mxu0
  %v494 = vadd.f32 0.0, %v493
  %495 = vmatprep.mubr.f32.mxu0 %v36
  %496 = vmatmul.mubr.f32.gmra.mrb[0].mxu0 %v35
  %v497 = vpop.f32.mrb[0].mxu0
  %v498 = vadd.f32 0.0, %v497
  %v499 = vpop.f32.mrb[0].mxu0
  %v500 = vadd.f32 0.0, %v499
  %501 = vmatprep.mubr.f32.mxu0 %v40
  %502 = vmatmul.mubr.f32.gmra.mrb[0].mxu0 %v39
  %v503 = vpop.f32.mrb[0].mxu0
  %v504 = vadd.f32 0.0, %v503
  %v505 = vpop.f32.mrb[0].mxu0
  %v506 = vadd.f32 0.0, %v505
  %507 = vmatprep.mubr.f32.mxu0 %v44
  %508 = vmatmul.mubr.f32.gmra.mrb[0].mxu0 %v43
  %v509 = vpop.f32.mrb[0].mxu0
  %v510 = vadd.f32 0.0, %v509
  %v511 = vpop.f32.mrb[0].mxu0
  %v512 = vadd.f32 0.0, %v511
  %513 = vmatprep.mubr.f32.mxu0 %v48
  %514 = vmatmul.mubr.f32.gmra.mrb[0].mxu0 %v47
  %v515 = vpop.f32.mrb[0].mxu0
  %v516 = vadd.f32 0.0, %v515
  %v517 = vpop.f32.mrb[0].mxu0
  %v518 = vadd.f32 0.0, %v517
  %519 = vmatprep.mubr.f32.mxu0 %v52
  %520 = vmatmul.mubr.f32.gmra.mrb[0].mxu0 %v51
  %v521 = vpop.f32.mrb[0].mxu0
  %v522 = vadd.f32 0.0, %v521
  %v523 = vpop.f32.mrb[0].mxu0
  %v524 = vadd.f32 0.0, %v523
  %525 = vmatprep.mubr.f32.mxu0 %v56
  %526 = vmatmul.mubr.f32.gmra.mrb[0].mxu0 %v55
  %v527 = vpop.f32.mrb[0].mxu0
  %v528 = vadd.f32 0.0, %v527
  %v529 = vpop.f32.mrb[0].mxu0
  %v530 = vadd.f32 0.0, %v529
  %531 = vmatprep.mubr.f32.mxu0 %v60
  %532 = vmatmul.mubr.f32.gmra.mrb[0].mxu0 %v59
  %v533 = vpop.f32.mrb[0].mxu0
  %v534 = vadd.f32 0.0, %v533
  %v535 = vpop.f32.mrb[0].mxu0
  %v536 = vadd.f32 0.0, %v535
  %537 = vmatprep.mubr.f32.mxu0 %v64
  %538 = vmatmul.mubr.f32.gmra.mrb[0].mxu0 %v63
  %v539 = vpop.f32.mrb[0].mxu0
  %v540 = vadd.f32 0.0, %v539
  %v541 = vpop.f32.mrb[0].mxu0
  %v542 = vadd.f32 0.0, %v541
  %543 = vmatprep.mubr.f32.mxu0 %v68
  %544 = vmatmul.mubr.f32.gmra.mrb[0].mxu0 %v67
  %v545 = vpop.f32.mrb[0].mxu0
  %v546 = vadd.f32 0.0, %v545
  %v547 = vpop.f32.mrb[0].mxu0
  %v548 = vadd.f32 0.0, %v547
  %549 = vmatprep.mubr.f32.mxu0 %v72
  %550 = vmatmul.mubr.f32.gmra.mrb[0].mxu0 %v71
  %v551 = vpop.f32.mrb[0].mxu0
  %v552 = vadd.f32 0.0, %v551
  %v553 = vpop.f32.mrb[0].mxu0
  %v554 = vadd.f32 0.0, %v553
  %555 = vmatprep.mubr.f32.mxu0 %v76
  %556 = vmatmul.mubr.f32.gmra.mrb[0].mxu0 %v75
  %v557 = vpop.f32.mrb[0].mxu0
  %v558 = vadd.f32 0.0, %v557
  %v559 = vpop.f32.mrb[0].mxu0
  %v560 = vadd.f32 0.0, %v559
  %561 = vmatprep.mubr.f32.mxu0 %v80
  %562 = vmatmul.mubr.f32.gmra.mrb[0].mxu0 %v79
  %v563 = vpop.f32.mrb[0].mxu0
  %v564 = vadd.f32 0.0, %v563
  %v565 = vpop.f32.mrb[0].mxu0
  %v566 = vadd.f32 0.0, %v565
  %567 = vmatprep.mubr.f32.mxu0 %v84
  %568 = vmatmul.mubr.f32.gmra.mrb[0].mxu0 %v83
  %v569 = vpop.f32.mrb[0].mxu0
  %v570 = vadd.f32 0.0, %v569
  %v571 = vpop.f32.mrb[0].mxu0
  %v572 = vadd.f32 0.0, %v571
  %573 = vmatprep.mubr.f32.mxu0 %v88
  %574 = vmatmul.mubr.f32.gmra.mrb[0].mxu0 %v87
  %v575 = vpop.f32.mrb[0].mxu0
  %v576 = vadd.f32 0.0, %v575
  %v577 = vpop.f32.mrb[0].mxu0
  %v578 = vadd.f32 0.0, %v577
  %579 = vmatprep.mubr.f32.mxu0 %v92
  %580 = vmatmul.mubr.f32.gmra.mrb[0].mxu0 %v91
  %v581 = vpop.f32.mrb[0].mxu0
  %v582 = vadd.f32 0.0, %v581
  %v583 = vpop.f32.mrb[0].mxu0
  %v584 = vadd.f32 0.0, %v583
  %585 = vmatprep.mubr.f32.mxu0 %v96
  %586 = vmatmul.mubr.f32.gmra.mrb[0].mxu0 %v95
  %v587 = vpop.f32.mrb[0].mxu0
  %v588 = vadd.f32 0.0, %v587
  %v589 = vpop.f32.mrb[0].mxu0
  %v590 = vadd.f32 0.0, %v589
  %591 = vmatprep.mubr.f32.mxu0 %v100
  %592 = vmatmul.mubr.f32.gmra.mrb[0].mxu0 %v99
  %v593 = vpop.f32.mrb[0].mxu0
  %v594 = vadd.f32 0.0, %v593
  %v595 = vpop.f32.mrb[0].mxu0
  %v596 = vadd.f32 0.0, %v595
  %597 = vmatprep.mubr.f32.mxu0 %v104
  %598 = vmatmul.mubr.f32.gmra.mrb[0].mxu0 %v103
  %v599 = vpop.f32.mrb[0].mxu0
  %v600 = vadd.f32 0.0, %v599
  %v601 = vpop.f32.mrb[0].mxu0
  %v602 = vadd.f32 0.0, %v601
  %603 = vmatprep.mubr.f32.mxu0 %v108
  %604 = vmatmul.mubr.f32.gmra.mrb[0].mxu0 %v107
  %v605 = vpop.f32.mrb[0].mxu0
  %v606 = vadd.f32 0.0, %v605
  %v607 = vpop.f32.mrb[0].mxu0
  %v608 = vadd.f32 0.0, %v607
  %609 = vmatprep.mubr.f32.mxu0 %v112
  %610 = vmatmul.mubr.f32.gmra.mrb[0].mxu0 %v111
  %v611 = vpop.f32.mrb[0].mxu0
  %v612 = vadd.f32 0.0, %v611
  %v613 = vpop.f32.mrb[0].mxu0
  %v614 = vadd.f32 0.0, %v613
  %615 = vmatprep.mubr.f32.mxu0 %v116
  %616 = vmatmul.mubr.f32.gmra.mrb[0].mxu0 %v115
  %v617 = vpop.f32.mrb[0].mxu0
  %v618 = vadd.f32 0.0, %v617
  %v619 = vpop.f32.mrb[0].mxu0
  %v620 = vadd.f32 0.0, %v619
  %621 = vmatprep.mubr.f32.mxu0 %v120
  %622 = vmatmul.mubr.f32.gmra.mrb[0].mxu0 %v119
  %v623 = vpop.f32.mrb[0].mxu0
  %v624 = vadd.f32 0.0, %v623
  %v625 = vpop.f32.mrb[0].mxu0
  %v626 = vadd.f32 0.0, %v625
  %627 = vmatprep.mubr.f32.mxu0 %v124
  %628 = vmatmul.mubr.f32.gmra.mrb[0].mxu0 %v123
  %v629 = vpop.f32.mrb[0].mxu0
  %v630 = vadd.f32 0.0, %v629
  %v631 = vpop.f32.mrb[0].mxu0
  %v632 = vadd.f32 0.0, %v631
  %633 = vmatprep.mubr.f32.mxu0 %v128
  %634 = vmatmul.mubr.f32.gmra.mrb[0].mxu0 %v127
  %v635 = vpop.f32.mrb[0].mxu0
  %v636 = vadd.f32 0.0, %v635
  %v637 = vpop.f32.mrb[0].mxu0
  %v638 = vadd.f32 0.0, %v637
  %639 = vmatprep.mubr.f32.mxu0 %v132
  %640 = vmatmul.mubr.f32.gmra.mrb[0].mxu0 %v131
  %v641 = vpop.f32.mrb[0].mxu0
  %v642 = vadd.f32 0.0, %v641
  %v643 = vpop.f32.mrb[0].mxu0
  %v644 = vadd.f32 0.0, %v643
  %645 = vmatprep.mubr.f32.mxu0 %v136
  %646 = vmatmul.mubr.f32.gmra.mrb[0].mxu0 %v135
  %v647 = vpop.f32.mrb[0].mxu0
  %v648 = vadd.f32 0.0, %v647
  %v649 = vpop.f32.mrb[0].mxu0
  %v650 = vadd.f32 0.0, %v649
  %651 = vdwg.mxu0
  %652 = vmatprep.subr.mxu0 %v268
  %653 = vmatpush1.msra.mxu0 %v267
  %654 = vmatprep.subr.mxu0 %v272
  %655 = vmatpush1.msra.mxu0 %v271
  %656 = vmatprep.subr.mxu0 %v276
  %657 = vmatpush1.msra.mxu0 %v275
  %658 = vmatprep.subr.mxu0 %v280
  %659 = vmatpush1.msra.mxu0 %v279
  %660 = vmatprep.subr.mxu0 %v284
  %661 = vmatpush1.msra.mxu0 %v283
  %662 = vmatprep.subr.mxu0 %v288
  %663 = vmatpush1.msra.mxu0 %v287
  %664 = vmatprep.subr.mxu0 %v292
  %665 = vmatpush1.msra.mxu0 %v291
  %666 = vmatprep.subr.mxu0 %v296
  %667 = vmatpush1.msra.mxu0 %v295
  %668 = vmatprep.subr.mxu0 %v300
  %669 = vmatpush1.msra.mxu0 %v299
  %670 = vmatprep.subr.mxu0 %v304
  %671 = vmatpush1.msra.mxu0 %v303
  %672 = vmatprep.subr.mxu0 %v308
  %673 = vmatpush1.msra.mxu0 %v307
  %674 = vmatprep.subr.mxu0 %v312
  %675 = vmatpush1.msra.mxu0 %v311
  %676 = vmatprep.subr.mxu0 %v316
  %677 = vmatpush1.msra.mxu0 %v315
  %678 = vmatprep.subr.mxu0 %v320
  %679 = vmatpush1.msra.mxu0 %v319
  %680 = vmatprep.subr.mxu0 %v324
  %681 = vmatpush1.msra.mxu0 %v323
  %682 = vmatprep.subr.mxu0 %v328
  %683 = vmatpush1.msra.mxu0 %v327
  %684 = vmatprep.subr.mxu0 %v332
  %685 = vmatpush1.msra.mxu0 %v331
  %686 = vmatprep.subr.mxu0 %v336
  %687 = vmatpush1.msra.mxu0 %v335
  %688 = vmatprep.subr.mxu0 %v340
  %689 = vmatpush1.msra.mxu0 %v339
  %690 = vmatprep.subr.mxu0 %v344
  %691 = vmatpush1.msra.mxu0 %v343
  %692 = vmatprep.subr.mxu0 %v348
  %693 = vmatpush1.msra.mxu0 %v347
  %694 = vmatprep.subr.mxu0 %v352
  %695 = vmatpush1.msra.mxu0 %v351
  %696 = vmatprep.subr.mxu0 %v356
  %697 = vmatpush1.msra.mxu0 %v355
  %698 = vmatprep.subr.mxu0 %v360
  %699 = vmatpush1.msra.mxu0 %v359
  %700 = vmatprep.subr.mxu0 %v364
  %701 = vmatpush1.msra.mxu0 %v363
  %702 = vmatprep.subr.mxu0 %v368
  %703 = vmatpush1.msra.mxu0 %v367
  %704 = vmatprep.subr.mxu0 %v372
  %705 = vmatpush1.msra.mxu0 %v371
  %706 = vmatprep.subr.mxu0 %v376
  %707 = vmatpush1.msra.mxu0 %v375
  %708 = vmatprep.subr.mxu0 %v380
  %709 = vmatpush1.msra.mxu0 %v379
  %710 = vmatprep.subr.mxu0 %v384
  %711 = vmatpush1.msra.mxu0 %v383
  %712 = vmatprep.subr.mxu0 %v388
  %713 = vmatpush1.msra.mxu0 %v387
  %714 = vmatprep.subr.mxu0 %v392
  %715 = vmatpush1.msra.mxu0 %v391
  %716 = vmatprep.mubr.f32.mxu0 %v14
  %717 = vmatmul.mubr.f32.gmra.mrb[0].mxu0 %v13
  %v718 = vpop.f32.mrb[0].mxu0
  %v719 = vadd.f32 %v462, %v718
  %v720 = vpop.f32.mrb[0].mxu0
  %v721 = vadd.f32 %v464, %v720
  %722 = vmatprep.mubr.f32.mxu0 %v18
  %723 = vmatmul.mubr.f32.gmra.mrb[0].mxu0 %v17
  %v724 = vpop.f32.mrb[0].mxu0
  %v725 = vadd.f32 %v468, %v724
  %v726 = vpop.f32.mrb[0].mxu0
  %v727 = vadd.f32 %v470, %v726
  %728 = vmatprep.mubr.f32.mxu0 %v22
  %729 = vmatmul.mubr.f32.gmra.mrb[0].mxu0 %v21
  %v730 = vpop.f32.mrb[0].mxu0
  %v731 = vadd.f32 %v474, %v730
  %v732 = vpop.f32.mrb[0].mxu0
  %v733 = vadd.f32 %v476, %v732
  %734 = vmatprep.mubr.f32.mxu0 %v26
  %735 = vmatmul.mubr.f32.gmra.mrb[0].mxu0 %v25
  %v736 = vpop.f32.mrb[0].mxu0
  %v737 = vadd.f32 %v480, %v736
  %v738 = vpop.f32.mrb[0].mxu0
  %v739 = vadd.f32 %v482, %v738
  %740 = vmatprep.mubr.f32.mxu0 %v30
  %741 = vmatmul.mubr.f32.gmra.mrb[0].mxu0 %v29
  %v742 = vpop.f32.mrb[0].mxu0
  %v743 = vadd.f32 %v486, %v742
  %v744 = vpop.f32.mrb[0].mxu0
  %v745 = vadd.f32 %v488, %v744
  %746 = vmatprep.mubr.f32.mxu0 %v34
  %747 = vmatmul.mubr.f32.gmra.mrb[0].mxu0 %v33
  %v748 = vpop.f32.mrb[0].mxu0
  %v749 = vadd.f32 %v492, %v748
  %v750 = vpop.f32.mrb[0].mxu0
  %v751 = vadd.f32 %v494, %v750
  %752 = vmatprep.mubr.f32.mxu0 %v38
  %753 = vmatmul.mubr.f32.gmra.mrb[0].mxu0 %v37
  %v754 = vpop.f32.mrb[0].mxu0
  %v755 = vadd.f32 %v498, %v754
  %v756 = vpop.f32.mrb[0].mxu0
  %v757 = vadd.f32 %v500, %v756
  %758 = vmatprep.mubr.f32.mxu0 %v42
  %759 = vmatmul.mubr.f32.gmra.mrb[0].mxu0 %v41
  %v760 = vpop.f32.mrb[0].mxu0
  %v761 = vadd.f32 %v504, %v760
  %v762 = vpop.f32.mrb[0].mxu0
  %v763 = vadd.f32 %v506, %v762
  %764 = vmatprep.mubr.f32.mxu0 %v46
  %765 = vmatmul.mubr.f32.gmra.mrb[0].mxu0 %v45
  %v766 = vpop.f32.mrb[0].mxu0
  %v767 = vadd.f32 %v510, %v766
  %v768 = vpop.f32.mrb[0].mxu0
  %v769 = vadd.f32 %v512, %v768
  %770 = vmatprep.mubr.f32.mxu0 %v50
  %771 = vmatmul.mubr.f32.gmra.mrb[0].mxu0 %v49
  %v772 = vpop.f32.mrb[0].mxu0
  %v773 = vadd.f32 %v516, %v772
  %v774 = vpop.f32.mrb[0].mxu0
  %v775 = vadd.f32 %v518, %v774
  %776 = vmatprep.mubr.f32.mxu0 %v54
  %777 = vmatmul.mubr.f32.gmra.mrb[0].mxu0 %v53
  %v778 = vpop.f32.mrb[0].mxu0
  %v779 = vadd.f32 %v522, %v778
  %v780 = vpop.f32.mrb[0].mxu0
  %v781 = vadd.f32 %v524, %v780
  %782 = vmatprep.mubr.f32.mxu0 %v58
  %783 = vmatmul.mubr.f32.gmra.mrb[0].mxu0 %v57
  %v784 = vpop.f32.mrb[0].mxu0
  %v785 = vadd.f32 %v528, %v784
  %v786 = vpop.f32.mrb[0].mxu0
  %v787 = vadd.f32 %v530, %v786
  %788 = vmatprep.mubr.f32.mxu0 %v62
  %789 = vmatmul.mubr.f32.gmra.mrb[0].mxu0 %v61
  %v790 = vpop.f32.mrb[0].mxu0
  %v791 = vadd.f32 %v534, %v790
  %v792 = vpop.f32.mrb[0].mxu0
  %v793 = vadd.f32 %v536, %v792
  %794 = vmatprep.mubr.f32.mxu0 %v66
  %795 = vmatmul.mubr.f32.gmra.mrb[0].mxu0 %v65
  %v796 = vpop.f32.mrb[0].mxu0
  %v797 = vadd.f32 %v540, %v796
  %v798 = vpop.f32.mrb[0].mxu0
  %v799 = vadd.f32 %v542, %v798
  %800 = vmatprep.mubr.f32.mxu0 %v70
  %801 = vmatmul.mubr.f32.gmra.mrb[0].mxu0 %v69
  %v802 = vpop.f32.mrb[0].mxu0
  %v803 = vadd.f32 %v546, %v802
  %v804 = vpop.f32.mrb[0].mxu0
  %v805 = vadd.f32 %v548, %v804
  %806 = vmatprep.mubr.f32.mxu0 %v74
  %807 = vmatmul.mubr.f32.gmra.mrb[0].mxu0 %v73
  %v808 = vpop.f32.mrb[0].mxu0
  %v809 = vadd.f32 %v552, %v808
  %v810 = vpop.f32.mrb[0].mxu0
  %v811 = vadd.f32 %v554, %v810
  %812 = vmatprep.mubr.f32.mxu0 %v78
  %813 = vmatmul.mubr.f32.gmra.mrb[0].mxu0 %v77
  %v814 = vpop.f32.mrb[0].mxu0
  %v815 = vadd.f32 %v558, %v814
  %v816 = vpop.f32.mrb[0].mxu0
  %v817 = vadd.f32 %v560, %v816
  %818 = vmatprep.mubr.f32.mxu0 %v82
  %819 = vmatmul.mubr.f32.gmra.mrb[0].mxu0 %v81
  %v820 = vpop.f32.mrb[0].mxu0
  %v821 = vadd.f32 %v564, %v820
  %v822 = vpop.f32.mrb[0].mxu0
  %v823 = vadd.f32 %v566, %v822
  %824 = vmatprep.mubr.f32.mxu0 %v86
  %825 = vmatmul.mubr.f32.gmra.mrb[0].mxu0 %v85
  %v826 = vpop.f32.mrb[0].mxu0
  %v827 = vadd.f32 %v570, %v826
  %v828 = vpop.f32.mrb[0].mxu0
  %v829 = vadd.f32 %v572, %v828
  %830 = vmatprep.mubr.f32.mxu0 %v90
  %831 = vmatmul.mubr.f32.gmra.mrb[0].mxu0 %v89
  %v832 = vpop.f32.mrb[0].mxu0
  %v833 = vadd.f32 %v576, %v832
  %v834 = vpop.f32.mrb[0].mxu0
  %v835 = vadd.f32 %v578, %v834
  %836 = vmatprep.mubr.f32.mxu0 %v94
  %837 = vmatmul.mubr.f32.gmra.mrb[0].mxu0 %v93
  %v838 = vpop.f32.mrb[0].mxu0
  %v839 = vadd.f32 %v582, %v838
  %v840 = vpop.f32.mrb[0].mxu0
  %v841 = vadd.f32 %v584, %v840
  %842 = vmatprep.mubr.f32.mxu0 %v98
  %843 = vmatmul.mubr.f32.gmra.mrb[0].mxu0 %v97
  %v844 = vpop.f32.mrb[0].mxu0
  %v845 = vadd.f32 %v588, %v844
  %v846 = vpop.f32.mrb[0].mxu0
  %v847 = vadd.f32 %v590, %v846
  %848 = vmatprep.mubr.f32.mxu0 %v102
  %849 = vmatmul.mubr.f32.gmra.mrb[0].mxu0 %v101
  %v850 = vpop.f32.mrb[0].mxu0
  %v851 = vadd.f32 %v594, %v850
  %v852 = vpop.f32.mrb[0].mxu0
  %v853 = vadd.f32 %v596, %v852
  %854 = vmatprep.mubr.f32.mxu0 %v106
  %855 = vmatmul.mubr.f32.gmra.mrb[0].mxu0 %v105
  %v856 = vpop.f32.mrb[0].mxu0
  %v857 = vadd.f32 %v600, %v856
  %v858 = vpop.f32.mrb[0].mxu0
  %v859 = vadd.f32 %v602, %v858
  %860 = vmatprep.mubr.f32.mxu0 %v110
  %861 = vmatmul.mubr.f32.gmra.mrb[0].mxu0 %v109
  %v862 = vpop.f32.mrb[0].mxu0
  %v863 = vadd.f32 %v606, %v862
  %v864 = vpop.f32.mrb[0].mxu0
  %v865 = vadd.f32 %v608, %v864
  %866 = vmatprep.mubr.f32.mxu0 %v114
  %867 = vmatmul.mubr.f32.gmra.mrb[0].mxu0 %v113
  %v868 = vpop.f32.mrb[0].mxu0
  %v869 = vadd.f32 %v612, %v868
  %v870 = vpop.f32.mrb[0].mxu0
  %v871 = vadd.f32 %v614, %v870
  %872 = vmatprep.mubr.f32.mxu0 %v118
  %873 = vmatmul.mubr.f32.gmra.mrb[0].mxu0 %v117
  %v874 = vpop.f32.mrb[0].mxu0
  %v875 = vadd.f32 %v618, %v874
  %v876 = vpop.f32.mrb[0].mxu0
  %v877 = vadd.f32 %v620, %v876
  %878 = vmatprep.mubr.f32.mxu0 %v122
  %879 = vmatmul.mubr.f32.gmra.mrb[0].mxu0 %v121
  %v880 = vpop.f32.mrb[0].mxu0
  %v881 = vadd.f32 %v624, %v880
  %v882 = vpop.f32.mrb[0].mxu0
  %v883 = vadd.f32 %v626, %v882
  %884 = vmatprep.mubr.f32.mxu0 %v126
  %885 = vmatmul.mubr.f32.gmra.mrb[0].mxu0 %v125
  %v886 = vpop.f32.mrb[0].mxu0
  %v887 = vadd.f32 %v630, %v886
  %v888 = vpop.f32.mrb[0].mxu0
  %v889 = vadd.f32 %v632, %v888
  %890 = vmatprep.mubr.f32.mxu0 %v130
  %891 = vmatmul.mubr.f32.gmra.mrb[0].mxu0 %v129
  %v892 = vpop.f32.mrb[0].mxu0
  %v893 = vadd.f32 %v636, %v892
  %v894 = vpop.f32.mrb[0].mxu0
  %v895 = vadd.f32 %v638, %v894
  %896 = vmatprep.mubr.f32.mxu0 %v134
  %897 = vmatmul.mubr.f32.gmra.mrb[0].mxu0 %v133
  %v898 = vpop.f32.mrb[0].mxu0
  %v899 = vadd.f32 %v642, %v898
  %v900 = vpop.f32.mrb[0].mxu0
  %v901 = vadd.f32 %v644, %v900
  %902 = vmatprep.mubr.f32.mxu0 %v138
  %903 = vmatmul.mubr.f32.gmra.mrb[0].mxu0 %v137
  %v904 = vpop.f32.mrb[0].mxu0
  %v905 = vadd.f32 %v648, %v904
  %v906 = vpop.f32.mrb[0].mxu0
  %v907 = vadd.f32 %v650, %v906
  %908 = vdwg.mxu0
  %909 = vmatprep.subr.mxu0 %v142
  %910 = vmatpush1.msra.mxu0 %v141
  %911 = vmatprep.subr.mxu0 %v146
  %912 = vmatpush1.msra.mxu0 %v145
  %913 = vmatprep.subr.mxu0 %v150
  %914 = vmatpush1.msra.mxu0 %v149
  %915 = vmatprep.subr.mxu0 %v154
  %916 = vmatpush1.msra.mxu0 %v153
  %917 = vmatprep.subr.mxu0 %v158
  %918 = vmatpush1.msra.mxu0 %v157
  %919 = vmatprep.subr.mxu0 %v162
  %920 = vmatpush1.msra.mxu0 %v161
  %921 = vmatprep.subr.mxu0 %v166
  %922 = vmatpush1.msra.mxu0 %v165
  %923 = vmatprep.subr.mxu0 %v170
  %924 = vmatpush1.msra.mxu0 %v169
  %925 = vmatprep.subr.mxu0 %v174
  %926 = vmatpush1.msra.mxu0 %v173
  %927 = vmatprep.subr.mxu0 %v178
  %928 = vmatpush1.msra.mxu0 %v177
  %929 = vmatprep.subr.mxu0 %v182
  %930 = vmatpush1.msra.mxu0 %v181
  %931 = vmatprep.subr.mxu0 %v186
  %932 = vmatpush1.msra.mxu0 %v185
  %933 = vmatprep.subr.mxu0 %v190
  %934 = vmatpush1.msra.mxu0 %v189
  %935 = vmatprep.subr.mxu0 %v194
  %936 = vmatpush1.msra.mxu0 %v193
  %937 = vmatprep.subr.mxu0 %v198
  %938 = vmatpush1.msra.mxu0 %v197
  %939 = vmatprep.subr.mxu0 %v202
  %940 = vmatpush1.msra.mxu0 %v201
  %941 = vmatprep.subr.mxu0 %v206
  %942 = vmatpush1.msra.mxu0 %v205
  %943 = vmatprep.subr.mxu0 %v210
  %944 = vmatpush1.msra.mxu0 %v209
  %945 = vmatprep.subr.mxu0 %v214
  %946 = vmatpush1.msra.mxu0 %v213
  %947 = vmatprep.subr.mxu0 %v218
  %948 = vmatpush1.msra.mxu0 %v217
  %949 = vmatprep.subr.mxu0 %v222
  %950 = vmatpush1.msra.mxu0 %v221
  %951 = vmatprep.subr.mxu0 %v226
  %952 = vmatpush1.msra.mxu0 %v225
  %953 = vmatprep.subr.mxu0 %v230
  %954 = vmatpush1.msra.mxu0 %v229
  %955 = vmatprep.subr.mxu0 %v234
  %956 = vmatpush1.msra.mxu0 %v233
  %957 = vmatprep.subr.mxu0 %v238
  %958 = vmatpush1.msra.mxu0 %v237
  %959 = vmatprep.subr.mxu0 %v242
  %960 = vmatpush1.msra.mxu0 %v241
  %961 = vmatprep.subr.mxu0 %v246
  %962 = vmatpush1.msra.mxu0 %v245
  %963 = vmatprep.subr.mxu0 %v250
  %964 = vmatpush1.msra.mxu0 %v249
  %965 = vmatprep.subr.mxu0 %v254
  %966 = vmatpush1.msra.mxu0 %v253
  %967 = vmatprep.subr.mxu0 %v258
  %968 = vmatpush1.msra.mxu0 %v257
  %969 = vmatprep.subr.mxu0 %v262
  %970 = vmatpush1.msra.mxu0 %v261
  %971 = vmatprep.subr.mxu0 %v266
  %972 = vmatpush1.msra.mxu0 %v265
  %973 = vmatprep.mubr.f32.mxu0 %v12
  %974 = vmatmul.mubr.f32.gmra.mrb[0].mxu0 %v11
  %v975 = vpop.f32.mrb[0].mxu0
  %v976 = vadd.f32 0.0, %v975
  %v977 = vpop.f32.mrb[0].mxu0
  %v978 = vadd.f32 0.0, %v977
  %979 = vmatprep.mubr.f32.mxu0 %v16
  %980 = vmatmul.mubr.f32.gmra.mrb[0].mxu0 %v15
  %v981 = vpop.f32.mrb[0].mxu0
  %v982 = vadd.f32 0.0, %v981
  %v983 = vpop.f32.mrb[0].mxu0
  %v984 = vadd.f32 0.0, %v983
  %985 = vmatprep.mubr.f32.mxu0 %v20
  %986 = vmatmul.mubr.f32.gmra.mrb[0].mxu0 %v19
  %v987 = vpop.f32.mrb[0].mxu0
  %v988 = vadd.f32 0.0, %v987
  %v989 = vpop.f32.mrb[0].mxu0
  %v990 = vadd.f32 0.0, %v989
  %991 = vmatprep.mubr.f32.mxu0 %v24
  %992 = vmatmul.mubr.f32.gmra.mrb[0].mxu0 %v23
  %v993 = vpop.f32.mrb[0].mxu0
  %v994 = vadd.f32 0.0, %v993
  %v995 = vpop.f32.mrb[0].mxu0
  %v996 = vadd.f32 0.0, %v995
  %997 = vmatprep.mubr.f32.mxu0 %v28
  %998 = vmatmul.mubr.f32.gmra.mrb[0].mxu0 %v27
  %v999 = vpop.f32.mrb[0].mxu0
  %v1000 = vadd.f32 0.0, %v999
  %v1001 = vpop.f32.mrb[0].mxu0
  %v1002 = vadd.f32 0.0, %v1001
  %1003 = vmatprep.mubr.f32.mxu0 %v32
  %1004 = vmatmul.mubr.f32.gmra.mrb[0].mxu0 %v31
  %v1005 = vpop.f32.mrb[0].mxu0
  %v1006 = vadd.f32 0.0, %v1005
  %v1007 = vpop.f32.mrb[0].mxu0
  %v1008 = vadd.f32 0.0, %v1007
  %1009 = vmatprep.mubr.f32.mxu0 %v36
  %1010 = vmatmul.mubr.f32.gmra.mrb[0].mxu0 %v35
  %v1011 = vpop.f32.mrb[0].mxu0
  %v1012 = vadd.f32 0.0, %v1011
  %v1013 = vpop.f32.mrb[0].mxu0
  %v1014 = vadd.f32 0.0, %v1013
  %1015 = vmatprep.mubr.f32.mxu0 %v40
  %1016 = vmatmul.mubr.f32.gmra.mrb[0].mxu0 %v39
  %v1017 = vpop.f32.mrb[0].mxu0
  %v1018 = vadd.f32 0.0, %v1017
  %v1019 = vpop.f32.mrb[0].mxu0
  %v1020 = vadd.f32 0.0, %v1019
  %1021 = vmatprep.mubr.f32.mxu0 %v44
  %1022 = vmatmul.mubr.f32.gmra.mrb[0].mxu0 %v43
  %v1023 = vpop.f32.mrb[0].mxu0
  %v1024 = vadd.f32 0.0, %v1023
  %v1025 = vpop.f32.mrb[0].mxu0
  %v1026 = vadd.f32 0.0, %v1025
  %1027 = vmatprep.mubr.f32.mxu0 %v48
  %1028 = vmatmul.mubr.f32.gmra.mrb[0].mxu0 %v47
  %v1029 = vpop.f32.mrb[0].mxu0
  %v1030 = vadd.f32 0.0, %v1029
  %v1031 = vpop.f32.mrb[0].mxu0
  %v1032 = vadd.f32 0.0, %v1031
  %1033 = vmatprep.mubr.f32.mxu0 %v52
  %1034 = vmatmul.mubr.f32.gmra.mrb[0].mxu0 %v51
  %v1035 = vpop.f32.mrb[0].mxu0
  %v1036 = vadd.f32 0.0, %v1035
  %v1037 = vpop.f32.mrb[0].mxu0
  %v1038 = vadd.f32 0.0, %v1037
  %1039 = vmatprep.mubr.f32.mxu0 %v56
  %1040 = vmatmul.mubr.f32.gmra.mrb[0].mxu0 %v55
  %v1041 = vpop.f32.mrb[0].mxu0
  %v1042 = vadd.f32 0.0, %v1041
  %v1043 = vpop.f32.mrb[0].mxu0
  %v1044 = vadd.f32 0.0, %v1043
  %1045 = vmatprep.mubr.f32.mxu0 %v60
  %1046 = vmatmul.mubr.f32.gmra.mrb[0].mxu0 %v59
  %v1047 = vpop.f32.mrb[0].mxu0
  %v1048 = vadd.f32 0.0, %v1047
  %v1049 = vpop.f32.mrb[0].mxu0
  %v1050 = vadd.f32 0.0, %v1049
  %1051 = vmatprep.mubr.f32.mxu0 %v64
  %1052 = vmatmul.mubr.f32.gmra.mrb[0].mxu0 %v63
  %v1053 = vpop.f32.mrb[0].mxu0
  %v1054 = vadd.f32 0.0, %v1053
  %v1055 = vpop.f32.mrb[0].mxu0
  %v1056 = vadd.f32 0.0, %v1055
  %1057 = vmatprep.mubr.f32.mxu0 %v68
  %1058 = vmatmul.mubr.f32.gmra.mrb[0].mxu0 %v67
  %v1059 = vpop.f32.mrb[0].mxu0
  %v1060 = vadd.f32 0.0, %v1059
  %v1061 = vpop.f32.mrb[0].mxu0
  %v1062 = vadd.f32 0.0, %v1061
  %1063 = vmatprep.mubr.f32.mxu0 %v72
  %1064 = vmatmul.mubr.f32.gmra.mrb[0].mxu0 %v71
  %v1065 = vpop.f32.mrb[0].mxu0
  %v1066 = vadd.f32 0.0, %v1065
  %v1067 = vpop.f32.mrb[0].mxu0
  %v1068 = vadd.f32 0.0, %v1067
  %1069 = vmatprep.mubr.f32.mxu0 %v76
  %1070 = vmatmul.mubr.f32.gmra.mrb[0].mxu0 %v75
  %v1071 = vpop.f32.mrb[0].mxu0
  %v1072 = vadd.f32 0.0, %v1071
  %v1073 = vpop.f32.mrb[0].mxu0
  %v1074 = vadd.f32 0.0, %v1073
  %1075 = vmatprep.mubr.f32.mxu0 %v80
  %1076 = vmatmul.mubr.f32.gmra.mrb[0].mxu0 %v79
  %v1077 = vpop.f32.mrb[0].mxu0
  %v1078 = vadd.f32 0.0, %v1077
  %v1079 = vpop.f32.mrb[0].mxu0
  %v1080 = vadd.f32 0.0, %v1079
  %1081 = vmatprep.mubr.f32.mxu0 %v84
  %1082 = vmatmul.mubr.f32.gmra.mrb[0].mxu0 %v83
  %v1083 = vpop.f32.mrb[0].mxu0
  %v1084 = vadd.f32 0.0, %v1083
  %v1085 = vpop.f32.mrb[0].mxu0
  %v1086 = vadd.f32 0.0, %v1085
  %1087 = vmatprep.mubr.f32.mxu0 %v88
  %1088 = vmatmul.mubr.f32.gmra.mrb[0].mxu0 %v87
  %v1089 = vpop.f32.mrb[0].mxu0
  %v1090 = vadd.f32 0.0, %v1089
  %v1091 = vpop.f32.mrb[0].mxu0
  %v1092 = vadd.f32 0.0, %v1091
  %1093 = vmatprep.mubr.f32.mxu0 %v92
  %1094 = vmatmul.mubr.f32.gmra.mrb[0].mxu0 %v91
  %v1095 = vpop.f32.mrb[0].mxu0
  %v1096 = vadd.f32 0.0, %v1095
  %v1097 = vpop.f32.mrb[0].mxu0
  %v1098 = vadd.f32 0.0, %v1097
  %1099 = vmatprep.mubr.f32.mxu0 %v96
  %1100 = vmatmul.mubr.f32.gmra.mrb[0].mxu0 %v95
  %v1101 = vpop.f32.mrb[0].mxu0
  %v1102 = vadd.f32 0.0, %v1101
  %v1103 = vpop.f32.mrb[0].mxu0
  %v1104 = vadd.f32 0.0, %v1103
  %1105 = vmatprep.mubr.f32.mxu0 %v100
  %1106 = vmatmul.mubr.f32.gmra.mrb[0].mxu0 %v99
  %v1107 = vpop.f32.mrb[0].mxu0
  %v1108 = vadd.f32 0.0, %v1107
  %v1109 = vpop.f32.mrb[0].mxu0
  %v1110 = vadd.f32 0.0, %v1109
  %1111 = vmatprep.mubr.f32.mxu0 %v104
  %1112 = vmatmul.mubr.f32.gmra.mrb[0].mxu0 %v103
  %v1113 = vpop.f32.mrb[0].mxu0
  %v1114 = vadd.f32 0.0, %v1113
  %v1115 = vpop.f32.mrb[0].mxu0
  %v1116 = vadd.f32 0.0, %v1115
  %1117 = vmatprep.mubr.f32.mxu0 %v108
  %1118 = vmatmul.mubr.f32.gmra.mrb[0].mxu0 %v107
  %v1119 = vpop.f32.mrb[0].mxu0
  %v1120 = vadd.f32 0.0, %v1119
  %v1121 = vpop.f32.mrb[0].mxu0
  %v1122 = vadd.f32 0.0, %v1121
  %1123 = vmatprep.mubr.f32.mxu0 %v112
  %1124 = vmatmul.mubr.f32.gmra.mrb[0].mxu0 %v111
  %v1125 = vpop.f32.mrb[0].mxu0
  %v1126 = vadd.f32 0.0, %v1125
  %v1127 = vpop.f32.mrb[0].mxu0
  %v1128 = vadd.f32 0.0, %v1127
  %1129 = vmatprep.mubr.f32.mxu0 %v116
  %1130 = vmatmul.mubr.f32.gmra.mrb[0].mxu0 %v115
  %v1131 = vpop.f32.mrb[0].mxu0
  %v1132 = vadd.f32 0.0, %v1131
  %v1133 = vpop.f32.mrb[0].mxu0
  %v1134 = vadd.f32 0.0, %v1133
  %1135 = vmatprep.mubr.f32.mxu0 %v120
  %1136 = vmatmul.mubr.f32.gmra.mrb[0].mxu0 %v119
  %v1137 = vpop.f32.mrb[0].mxu0
  %v1138 = vadd.f32 0.0, %v1137
  %v1139 = vpop.f32.mrb[0].mxu0
  %v1140 = vadd.f32 0.0, %v1139
  %1141 = vmatprep.mubr.f32.mxu0 %v124
  %1142 = vmatmul.mubr.f32.gmra.mrb[0].mxu0 %v123
  %v1143 = vpop.f32.mrb[0].mxu0
  %v1144 = vadd.f32 0.0, %v1143
  %v1145 = vpop.f32.mrb[0].mxu0
  %v1146 = vadd.f32 0.0, %v1145
  %1147 = vmatprep.mubr.f32.mxu0 %v128
  %1148 = vmatmul.mubr.f32.gmra.mrb[0].mxu0 %v127
  %v1149 = vpop.f32.mrb[0].mxu0
  %v1150 = vadd.f32 0.0, %v1149
  %v1151 = vpop.f32.mrb[0].mxu0
  %v1152 = vadd.f32 0.0, %v1151
  %1153 = vmatprep.mubr.f32.mxu0 %v132
  %1154 = vmatmul.mubr.f32.gmra.mrb[0].mxu0 %v131
  %v1155 = vpop.f32.mrb[0].mxu0
  %v1156 = vadd.f32 0.0, %v1155
  %v1157 = vpop.f32.mrb[0].mxu0
  %v1158 = vadd.f32 0.0, %v1157
  %1159 = vmatprep.mubr.f32.mxu0 %v136
  %1160 = vmatmul.mubr.f32.gmra.mrb[0].mxu0 %v135
  %v1161 = vpop.f32.mrb[0].mxu0
  %v1162 = vadd.f32 0.0, %v1161
  %v1163 = vpop.f32.mrb[0].mxu0
  %v1164 = vadd.f32 0.0, %v1163
  %1165 = vdwg.mxu0
  %1166 = vmatprep.subr.mxu0 %v270
  %1167 = vmatpush1.msra.mxu0 %v269
  %1168 = vmatprep.subr.mxu0 %v274
  %1169 = vmatpush1.msra.mxu0 %v273
  %1170 = vmatprep.subr.mxu0 %v278
  %1171 = vmatpush1.msra.mxu0 %v277
  %1172 = vmatprep.subr.mxu0 %v282
  %1173 = vmatpush1.msra.mxu0 %v281
  %1174 = vmatprep.subr.mxu0 %v286
  %1175 = vmatpush1.msra.mxu0 %v285
  %1176 = vmatprep.subr.mxu0 %v290
  %1177 = vmatpush1.msra.mxu0 %v289
  %1178 = vmatprep.subr.mxu0 %v294
  %1179 = vmatpush1.msra.mxu0 %v293
  %1180 = vmatprep.subr.mxu0 %v298
  %1181 = vmatpush1.msra.mxu0 %v297
  %1182 = vmatprep.subr.mxu0 %v302
  %1183 = vmatpush1.msra.mxu0 %v301
  %1184 = vmatprep.subr.mxu0 %v306
  %1185 = vmatpush1.msra.mxu0 %v305
  %1186 = vmatprep.subr.mxu0 %v310
  %1187 = vmatpush1.msra.mxu0 %v309
  %1188 = vmatprep.subr.mxu0 %v314
  %1189 = vmatpush1.msra.mxu0 %v313
  %1190 = vmatprep.subr.mxu0 %v318
  %1191 = vmatpush1.msra.mxu0 %v317
  %1192 = vmatprep.subr.mxu0 %v322
  %1193 = vmatpush1.msra.mxu0 %v321
  %1194 = vmatprep.subr.mxu0 %v326
  %1195 = vmatpush1.msra.mxu0 %v325
  %1196 = vmatprep.subr.mxu0 %v330
  %1197 = vmatpush1.msra.mxu0 %v329
  %1198 = vmatprep.subr.mxu0 %v334
  %1199 = vmatpush1.msra.mxu0 %v333
  %1200 = vmatprep.subr.mxu0 %v338
  %1201 = vmatpush1.msra.mxu0 %v337
  %1202 = vmatprep.subr.mxu0 %v342
  %1203 = vmatpush1.msra.mxu0 %v341
  %1204 = vmatprep.subr.mxu0 %v346
  %1205 = vmatpush1.msra.mxu0 %v345
  %1206 = vmatprep.subr.mxu0 %v350
  %1207 = vmatpush1.msra.mxu0 %v349
  %1208 = vmatprep.subr.mxu0 %v354
  %1209 = vmatpush1.msra.mxu0 %v353
  %1210 = vmatprep.subr.mxu0 %v358
  %1211 = vmatpush1.msra.mxu0 %v357
  %1212 = vmatprep.subr.mxu0 %v362
  %1213 = vmatpush1.msra.mxu0 %v361
  %1214 = vmatprep.subr.mxu0 %v366
  %1215 = vmatpush1.msra.mxu0 %v365
  %1216 = vmatprep.subr.mxu0 %v370
  %1217 = vmatpush1.msra.mxu0 %v369
  %1218 = vmatprep.subr.mxu0 %v374
  %1219 = vmatpush1.msra.mxu0 %v373
  %1220 = vmatprep.subr.mxu0 %v378
  %1221 = vmatpush1.msra.mxu0 %v377
  %1222 = vmatprep.subr.mxu0 %v382
  %1223 = vmatpush1.msra.mxu0 %v381
  %1224 = vmatprep.subr.mxu0 %v386
  %1225 = vmatpush1.msra.mxu0 %v385
  %1226 = vmatprep.subr.mxu0 %v390
  %1227 = vmatpush1.msra.mxu0 %v389
  %1228 = vmatprep.subr.mxu0 %v394
  %1229 = vmatpush1.msra.mxu0 %v393
  %1230 = vmatprep.mubr.f32.mxu0 %v14
  %1231 = vmatmul.mubr.f32.gmra.mrb[0].mxu0 %v13
  %v1232 = vpop.f32.mrb[0].mxu0
  %v1233 = vadd.f32 %v976, %v1232
  %v1234 = vpop.f32.mrb[0].mxu0
  %v1235 = vadd.f32 %v978, %v1234
  %1236 = vmatprep.mubr.f32.mxu0 %v18
  %1237 = vmatmul.mubr.f32.gmra.mrb[0].mxu0 %v17
  %v1238 = vpop.f32.mrb[0].mxu0
  %v1239 = vadd.f32 %v982, %v1238
  %v1240 = vpop.f32.mrb[0].mxu0
  %v1241 = vadd.f32 %v984, %v1240
  %1242 = vmatprep.mubr.f32.mxu0 %v22
  %1243 = vmatmul.mubr.f32.gmra.mrb[0].mxu0 %v21
  %v1244 = vpop.f32.mrb[0].mxu0
  %v1245 = vadd.f32 %v988, %v1244
  %v1246 = vpop.f32.mrb[0].mxu0
  %v1247 = vadd.f32 %v990, %v1246
  %1248 = vmatprep.mubr.f32.mxu0 %v26
  %1249 = vmatmul.mubr.f32.gmra.mrb[0].mxu0 %v25
  %v1250 = vpop.f32.mrb[0].mxu0
  %v1251 = vadd.f32 %v994, %v1250
  %v1252 = vpop.f32.mrb[0].mxu0
  %v1253 = vadd.f32 %v996, %v1252
  %1254 = vmatprep.mubr.f32.mxu0 %v30
  %1255 = vmatmul.mubr.f32.gmra.mrb[0].mxu0 %v29
  %v1256 = vpop.f32.mrb[0].mxu0
  %v1257 = vadd.f32 %v1000, %v1256
  %v1258 = vpop.f32.mrb[0].mxu0
  %v1259 = vadd.f32 %v1002, %v1258
  %1260 = vmatprep.mubr.f32.mxu0 %v34
  %1261 = vmatmul.mubr.f32.gmra.mrb[0].mxu0 %v33
  %v1262 = vpop.f32.mrb[0].mxu0
  %v1263 = vadd.f32 %v1006, %v1262
  %v1264 = vpop.f32.mrb[0].mxu0
  %v1265 = vadd.f32 %v1008, %v1264
  %1266 = vmatprep.mubr.f32.mxu0 %v38
  %1267 = vmatmul.mubr.f32.gmra.mrb[0].mxu0 %v37
  %v1268 = vpop.f32.mrb[0].mxu0
  %v1269 = vadd.f32 %v1012, %v1268
  %v1270 = vpop.f32.mrb[0].mxu0
  %v1271 = vadd.f32 %v1014, %v1270
  %1272 = vmatprep.mubr.f32.mxu0 %v42
  %1273 = vmatmul.mubr.f32.gmra.mrb[0].mxu0 %v41
  %v1274 = vpop.f32.mrb[0].mxu0
  %v1275 = vadd.f32 %v1018, %v1274
  %v1276 = vpop.f32.mrb[0].mxu0
  %v1277 = vadd.f32 %v1020, %v1276
  %1278 = vmatprep.mubr.f32.mxu0 %v46
  %1279 = vmatmul.mubr.f32.gmra.mrb[0].mxu0 %v45
  %v1280 = vpop.f32.mrb[0].mxu0
  %v1281 = vadd.f32 %v1024, %v1280
  %v1282 = vpop.f32.mrb[0].mxu0
  %v1283 = vadd.f32 %v1026, %v1282
  %1284 = vmatprep.mubr.f32.mxu0 %v50
  %1285 = vmatmul.mubr.f32.gmra.mrb[0].mxu0 %v49
  %v1286 = vpop.f32.mrb[0].mxu0
  %v1287 = vadd.f32 %v1030, %v1286
  %v1288 = vpop.f32.mrb[0].mxu0
  %v1289 = vadd.f32 %v1032, %v1288
  %1290 = vmatprep.mubr.f32.mxu0 %v54
  %1291 = vmatmul.mubr.f32.gmra.mrb[0].mxu0 %v53
  %v1292 = vpop.f32.mrb[0].mxu0
  %v1293 = vadd.f32 %v1036, %v1292
  %v1294 = vpop.f32.mrb[0].mxu0
  %v1295 = vadd.f32 %v1038, %v1294
  %1296 = vmatprep.mubr.f32.mxu0 %v58
  %1297 = vmatmul.mubr.f32.gmra.mrb[0].mxu0 %v57
  %v1298 = vpop.f32.mrb[0].mxu0
  %v1299 = vadd.f32 %v1042, %v1298
  %v1300 = vpop.f32.mrb[0].mxu0
  %v1301 = vadd.f32 %v1044, %v1300
  %1302 = vmatprep.mubr.f32.mxu0 %v62
  %1303 = vmatmul.mubr.f32.gmra.mrb[0].mxu0 %v61
  %v1304 = vpop.f32.mrb[0].mxu0
  %v1305 = vadd.f32 %v1048, %v1304
  %v1306 = vpop.f32.mrb[0].mxu0
  %v1307 = vadd.f32 %v1050, %v1306
  %1308 = vmatprep.mubr.f32.mxu0 %v66
  %1309 = vmatmul.mubr.f32.gmra.mrb[0].mxu0 %v65
  %v1310 = vpop.f32.mrb[0].mxu0
  %v1311 = vadd.f32 %v1054, %v1310
  %v1312 = vpop.f32.mrb[0].mxu0
  %v1313 = vadd.f32 %v1056, %v1312
  %1314 = vmatprep.mubr.f32.mxu0 %v70
  %1315 = vmatmul.mubr.f32.gmra.mrb[0].mxu0 %v69
  %v1316 = vpop.f32.mrb[0].mxu0
  %v1317 = vadd.f32 %v1060, %v1316
  %v1318 = vpop.f32.mrb[0].mxu0
  %v1319 = vadd.f32 %v1062, %v1318
  %1320 = vmatprep.mubr.f32.mxu0 %v74
  %1321 = vmatmul.mubr.f32.gmra.mrb[0].mxu0 %v73
  %v1322 = vpop.f32.mrb[0].mxu0
  %v1323 = vadd.f32 %v1066, %v1322
  %v1324 = vpop.f32.mrb[0].mxu0
  %v1325 = vadd.f32 %v1068, %v1324
  %1326 = vmatprep.mubr.f32.mxu0 %v78
  %1327 = vmatmul.mubr.f32.gmra.mrb[0].mxu0 %v77
  %v1328 = vpop.f32.mrb[0].mxu0
  %v1329 = vadd.f32 %v1072, %v1328
  %v1330 = vpop.f32.mrb[0].mxu0
  %v1331 = vadd.f32 %v1074, %v1330
  %1332 = vmatprep.mubr.f32.mxu0 %v82
  %1333 = vmatmul.mubr.f32.gmra.mrb[0].mxu0 %v81
  %v1334 = vpop.f32.mrb[0].mxu0
  %v1335 = vadd.f32 %v1078, %v1334
  %v1336 = vpop.f32.mrb[0].mxu0
  %v1337 = vadd.f32 %v1080, %v1336
  %1338 = vmatprep.mubr.f32.mxu0 %v86
  %1339 = vmatmul.mubr.f32.gmra.mrb[0].mxu0 %v85
  %v1340 = vpop.f32.mrb[0].mxu0
  %v1341 = vadd.f32 %v1084, %v1340
  %v1342 = vpop.f32.mrb[0].mxu0
  %v1343 = vadd.f32 %v1086, %v1342
  %1344 = vmatprep.mubr.f32.mxu0 %v90
  %1345 = vmatmul.mubr.f32.gmra.mrb[0].mxu0 %v89
  %v1346 = vpop.f32.mrb[0].mxu0
  %v1347 = vadd.f32 %v1090, %v1346
  %v1348 = vpop.f32.mrb[0].mxu0
  %v1349 = vadd.f32 %v1092, %v1348
  %1350 = vmatprep.mubr.f32.mxu0 %v94
  %1351 = vmatmul.mubr.f32.gmra.mrb[0].mxu0 %v93
  %v1352 = vpop.f32.mrb[0].mxu0
  %v1353 = vadd.f32 %v1096, %v1352
  %v1354 = vpop.f32.mrb[0].mxu0
  %v1355 = vadd.f32 %v1098, %v1354
  %1356 = vmatprep.mubr.f32.mxu0 %v98
  %1357 = vmatmul.mubr.f32.gmra.mrb[0].mxu0 %v97
  %v1358 = vpop.f32.mrb[0].mxu0
  %v1359 = vadd.f32 %v1102, %v1358
  %v1360 = vpop.f32.mrb[0].mxu0
  %v1361 = vadd.f32 %v1104, %v1360
  %1362 = vmatprep.mubr.f32.mxu0 %v102
  %1363 = vmatmul.mubr.f32.gmra.mrb[0].mxu0 %v101
  %v1364 = vpop.f32.mrb[0].mxu0
  %v1365 = vadd.f32 %v1108, %v1364
  %v1366 = vpop.f32.mrb[0].mxu0
  %v1367 = vadd.f32 %v1110, %v1366
  %1368 = vmatprep.mubr.f32.mxu0 %v106
  %1369 = vmatmul.mubr.f32.gmra.mrb[0].mxu0 %v105
  %v1370 = vpop.f32.mrb[0].mxu0
  %v1371 = vadd.f32 %v1114, %v1370
  %v1372 = vpop.f32.mrb[0].mxu0
  %v1373 = vadd.f32 %v1116, %v1372
  %1374 = vmatprep.mubr.f32.mxu0 %v110
  %1375 = vmatmul.mubr.f32.gmra.mrb[0].mxu0 %v109
  %v1376 = vpop.f32.mrb[0].mxu0
  %v1377 = vadd.f32 %v1120, %v1376
  %v1378 = vpop.f32.mrb[0].mxu0
  %v1379 = vadd.f32 %v1122, %v1378
  %1380 = vmatprep.mubr.f32.mxu0 %v114
  %1381 = vmatmul.mubr.f32.gmra.mrb[0].mxu0 %v113
  %v1382 = vpop.f32.mrb[0].mxu0
  %v1383 = vadd.f32 %v1126, %v1382
  %v1384 = vpop.f32.mrb[0].mxu0
  %v1385 = vadd.f32 %v1128, %v1384
  %1386 = vmatprep.mubr.f32.mxu0 %v118
  %1387 = vmatmul.mubr.f32.gmra.mrb[0].mxu0 %v117
  %v1388 = vpop.f32.mrb[0].mxu0
  %v1389 = vadd.f32 %v1132, %v1388
  %v1390 = vpop.f32.mrb[0].mxu0
  %v1391 = vadd.f32 %v1134, %v1390
  %1392 = vmatprep.mubr.f32.mxu0 %v122
  %1393 = vmatmul.mubr.f32.gmra.mrb[0].mxu0 %v121
  %v1394 = vpop.f32.mrb[0].mxu0
  %v1395 = vadd.f32 %v1138, %v1394
  %v1396 = vpop.f32.mrb[0].mxu0
  %v1397 = vadd.f32 %v1140, %v1396
  %1398 = vmatprep.mubr.f32.mxu0 %v126
  %1399 = vmatmul.mubr.f32.gmra.mrb[0].mxu0 %v125
  %v1400 = vpop.f32.mrb[0].mxu0
  %v1401 = vadd.f32 %v1144, %v1400
  %v1402 = vpop.f32.mrb[0].mxu0
  %v1403 = vadd.f32 %v1146, %v1402
  %1404 = vmatprep.mubr.f32.mxu0 %v130
  %1405 = vmatmul.mubr.f32.gmra.mrb[0].mxu0 %v129
  %v1406 = vpop.f32.mrb[0].mxu0
  %v1407 = vadd.f32 %v1150, %v1406
  %v1408 = vpop.f32.mrb[0].mxu0
  %v1409 = vadd.f32 %v1152, %v1408
  %1410 = vmatprep.mubr.f32.mxu0 %v134
  %1411 = vmatmul.mubr.f32.gmra.mrb[0].mxu0 %v133
  %v1412 = vpop.f32.mrb[0].mxu0
  %v1413 = vadd.f32 %v1156, %v1412
  %v1414 = vpop.f32.mrb[0].mxu0
  %v1415 = vadd.f32 %v1158, %v1414
  %1416 = vmatprep.mubr.f32.mxu0 %v138
  %1417 = vmatmul.mubr.f32.gmra.mrb[0].mxu0 %v137
  %v1418 = vpop.f32.mrb[0].mxu0
  %v1419 = vadd.f32 %v1162, %v1418
  %v1420 = vpop.f32.mrb[0].mxu0
  %v1421 = vadd.f32 %v1164, %v1420
  %1422 = vdwg.mxu0
  %1423 = vst [vmem:[%s2] sm:$0xff] %v719
  %1424 = vst [vmem:[%s2 + $0x8] sm:$0xff] %v721
  %1425 = vst [vmem:[%s2 + $0x10] sm:$0xff] %v1233
  %1426 = vst [vmem:[%s2 + $0x18] sm:$0xff] %v1235
  %1427 = vst [vmem:[%s2 + $0x20] sm:$0xff] %v725
  %1428 = vst [vmem:[%s2 + $0x28] sm:$0xff] %v727
  %1429 = vst [vmem:[%s2 + $0x30] sm:$0xff] %v1239
  %1430 = vst [vmem:[%s2 + $0x38] sm:$0xff] %v1241
  %1431 = vst [vmem:[%s2 + $0x40] sm:$0xff] %v731
  %1432 = vst [vmem:[%s2 + $0x48] sm:$0xff] %v733
  %1433 = vst [vmem:[%s2 + $0x50] sm:$0xff] %v1245
  %1434 = vst [vmem:[%s2 + $0x58] sm:$0xff] %v1247
  %1435 = vst [vmem:[%s2 + $0x60] sm:$0xff] %v737
  %1436 = vst [vmem:[%s2 + $0x68] sm:$0xff] %v739
  %1437 = vst [vmem:[%s2 + $0x70] sm:$0xff] %v1251
  %1438 = vst [vmem:[%s2 + $0x78] sm:$0xff] %v1253
  %1439 = vst [vmem:[%s2 + $0x80] sm:$0xff] %v743
  %1440 = vst [vmem:[%s2 + $0x88] sm:$0xff] %v745
  %1441 = vst [vmem:[%s2 + $0x90] sm:$0xff] %v1257
  %1442 = vst [vmem:[%s2 + $0x98] sm:$0xff] %v1259
  %1443 = vst [vmem:[%s2 + $0xa0] sm:$0xff] %v749
  %1444 = vst [vmem:[%s2 + $0xa8] sm:$0xff] %v751
  %1445 = vst [vmem:[%s2 + $0xb0] sm:$0xff] %v1263
  %1446 = vst [vmem:[%s2 + $0xb8] sm:$0xff] %v1265
  %1447 = vst [vmem:[%s2 + $0xc0] sm:$0xff] %v755
  %1448 = vst [vmem:[%s2 + $0xc8] sm:$0xff] %v757
  %1449 = vst [vmem:[%s2 + $0xd0] sm:$0xff] %v1269
  %1450 = vst [vmem:[%s2 + $0xd8] sm:$0xff] %v1271
  %1451 = vst [vmem:[%s2 + $0xe0] sm:$0xff] %v761
  %1452 = vst [vmem:[%s2 + $0xe8] sm:$0xff] %v763
  %1453 = vst [vmem:[%s2 + $0xf0] sm:$0xff] %v1275
  %1454 = vst [vmem:[%s2 + $0xf8] sm:$0xff] %v1277
  %1455 = vst [vmem:[%s2 + $0x100] sm:$0xff] %v767
  %1456 = vst [vmem:[%s2 + $0x108] sm:$0xff] %v769
  %1457 = vst [vmem:[%s2 + $0x110] sm:$0xff] %v1281
  %1458 = vst [vmem:[%s2 + $0x118] sm:$0xff] %v1283
  %1459 = vst [vmem:[%s2 + $0x120] sm:$0xff] %v773
  %1460 = vst [vmem:[%s2 + $0x128] sm:$0xff] %v775
  %1461 = vst [vmem:[%s2 + $0x130] sm:$0xff] %v1287
  %1462 = vst [vmem:[%s2 + $0x138] sm:$0xff] %v1289
  %1463 = vst [vmem:[%s2 + $0x140] sm:$0xff] %v779
  %1464 = vst [vmem:[%s2 + $0x148] sm:$0xff] %v781
  %1465 = vst [vmem:[%s2 + $0x150] sm:$0xff] %v1293
  %1466 = vst [vmem:[%s2 + $0x158] sm:$0xff] %v1295
  %1467 = vst [vmem:[%s2 + $0x160] sm:$0xff] %v785
  %1468 = vst [vmem:[%s2 + $0x168] sm:$0xff] %v787
  %1469 = vst [vmem:[%s2 + $0x170] sm:$0xff] %v1299
  %1470 = vst [vmem:[%s2 + $0x178] sm:$0xff] %v1301
  %1471 = vst [vmem:[%s2 + $0x180] sm:$0xff] %v791
  %1472 = vst [vmem:[%s2 + $0x188] sm:$0xff] %v793
  %1473 = vst [vmem:[%s2 + $0x190] sm:$0xff] %v1305
  %1474 = vst [vmem:[%s2 + $0x198] sm:$0xff] %v1307
  %1475 = vst [vmem:[%s2 + $0x1a0] sm:$0xff] %v797
  %1476 = vst [vmem:[%s2 + $0x1a8] sm:$0xff] %v799
  %1477 = vst [vmem:[%s2 + $0x1b0] sm:$0xff] %v1311
  %1478 = vst [vmem:[%s2 + $0x1b8] sm:$0xff] %v1313
  %1479 = vst [vmem:[%s2 + $0x1c0] sm:$0xff] %v803
  %1480 = vst [vmem:[%s2 + $0x1c8] sm:$0xff] %v805
  %1481 = vst [vmem:[%s2 + $0x1d0] sm:$0xff] %v1317
  %1482 = vst [vmem:[%s2 + $0x1d8] sm:$0xff] %v1319
  %1483 = vst [vmem:[%s2 + $0x1e0] sm:$0xff] %v809
  %1484 = vst [vmem:[%s2 + $0x1e8] sm:$0xff] %v811
  %1485 = vst [vmem:[%s2 + $0x1f0] sm:$0xff] %v1323
  %1486 = vst [vmem:[%s2 + $0x1f8] sm:$0xff] %v1325
  %1487 = vst [vmem:[%s2 + $0x200] sm:$0xff] %v815
  %1488 = vst [vmem:[%s2 + $0x208] sm:$0xff] %v817
  %1489 = vst [vmem:[%s2 + $0x210] sm:$0xff] %v1329
  %1490 = vst [vmem:[%s2 + $0x218] sm:$0xff] %v1331
  %1491 = vst [vmem:[%s2 + $0x220] sm:$0xff] %v821
  %1492 = vst [vmem:[%s2 + $0x228] sm:$0xff] %v823
  %1493 = vst [vmem:[%s2 + $0x230] sm:$0xff] %v1335
  %1494 = vst [vmem:[%s2 + $0x238] sm:$0xff] %v1337
  %1495 = vst [vmem:[%s2 + $0x240] sm:$0xff] %v827
  %1496 = vst [vmem:[%s2 + $0x248] sm:$0xff] %v829
  %1497 = vst [vmem:[%s2 + $0x250] sm:$0xff] %v1341
  %1498 = vst [vmem:[%s2 + $0x258] sm:$0xff] %v1343
  %1499 = vst [vmem:[%s2 + $0x260] sm:$0xff] %v833
  %1500 = vst [vmem:[%s2 + $0x268] sm:$0xff] %v835
  %1501 = vst [vmem:[%s2 + $0x270] sm:$0xff] %v1347
  %1502 = vst [vmem:[%s2 + $0x278] sm:$0xff] %v1349
  %1503 = vst [vmem:[%s2 + $0x280] sm:$0xff] %v839
  %1504 = vst [vmem:[%s2 + $0x288] sm:$0xff] %v841
  %1505 = vst [vmem:[%s2 + $0x290] sm:$0xff] %v1353
  %1506 = vst [vmem:[%s2 + $0x298] sm:$0xff] %v1355
  %1507 = vst [vmem:[%s2 + $0x2a0] sm:$0xff] %v845
  %1508 = vst [vmem:[%s2 + $0x2a8] sm:$0xff] %v847
  %1509 = vst [vmem:[%s2 + $0x2b0] sm:$0xff] %v1359
  %1510 = vst [vmem:[%s2 + $0x2b8] sm:$0xff] %v1361
  %1511 = vst [vmem:[%s2 + $0x2c0] sm:$0xff] %v851
  %1512 = vst [vmem:[%s2 + $0x2c8] sm:$0xff] %v853
  %1513 = vst [vmem:[%s2 + $0x2d0] sm:$0xff] %v1365
  %1514 = vst [vmem:[%s2 + $0x2d8] sm:$0xff] %v1367
  %1515 = vst [vmem:[%s2 + $0x2e0] sm:$0xff] %v857
  %1516 = vst [vmem:[%s2 + $0x2e8] sm:$0xff] %v859
  %1517 = vst [vmem:[%s2 + $0x2f0] sm:$0xff] %v1371
  %1518 = vst [vmem:[%s2 + $0x2f8] sm:$0xff] %v1373
  %1519 = vst [vmem:[%s2 + $0x300] sm:$0xff] %v863
  %1520 = vst [vmem:[%s2 + $0x308] sm:$0xff] %v865
  %1521 = vst [vmem:[%s2 + $0x310] sm:$0xff] %v1377
  %1522 = vst [vmem:[%s2 + $0x318] sm:$0xff] %v1379
  %1523 = vst [vmem:[%s2 + $0x320] sm:$0xff] %v869
  %1524 = vst [vmem:[%s2 + $0x328] sm:$0xff] %v871
  %1525 = vst [vmem:[%s2 + $0x330] sm:$0xff] %v1383
  %1526 = vst [vmem:[%s2 + $0x338] sm:$0xff] %v1385
  %1527 = vst [vmem:[%s2 + $0x340] sm:$0xff] %v875
  %1528 = vst [vmem:[%s2 + $0x348] sm:$0xff] %v877
  %1529 = vst [vmem:[%s2 + $0x350] sm:$0xff] %v1389
  %1530 = vst [vmem:[%s2 + $0x358] sm:$0xff] %v1391
  %1531 = vst [vmem:[%s2 + $0x360] sm:$0xff] %v881
  %1532 = vst [vmem:[%s2 + $0x368] sm:$0xff] %v883
  %1533 = vst [vmem:[%s2 + $0x370] sm:$0xff] %v1395
  %1534 = vst [vmem:[%s2 + $0x378] sm:$0xff] %v1397
  %1535 = vst [vmem:[%s2 + $0x380] sm:$0xff] %v887
  %1536 = vst [vmem:[%s2 + $0x388] sm:$0xff] %v889
  %1537 = vst [vmem:[%s2 + $0x390] sm:$0xff] %v1401
  %1538 = vst [vmem:[%s2 + $0x398] sm:$0xff] %v1403
  %1539 = vst [vmem:[%s2 + $0x3a0] sm:$0xff] %v893
  %1540 = vst [vmem:[%s2 + $0x3a8] sm:$0xff] %v895
  %1541 = vst [vmem:[%s2 + $0x3b0] sm:$0xff] %v1407
  %1542 = vst [vmem:[%s2 + $0x3b8] sm:$0xff] %v1409
  %1543 = vst [vmem:[%s2 + $0x3c0] sm:$0xff] %v899
  %1544 = vst [vmem:[%s2 + $0x3c8] sm:$0xff] %v901
  %1545 = vst [vmem:[%s2 + $0x3d0] sm:$0xff] %v1413
  %1546 = vst [vmem:[%s2 + $0x3d8] sm:$0xff] %v1415
  %1547 = vst [vmem:[%s2 + $0x3e0] sm:$0xff] %v905
  %1548 = vst [vmem:[%s2 + $0x3e8] sm:$0xff] %v907
  %1549 = vst [vmem:[%s2 + $0x3f0] sm:$0xff] %v1419
  %1550 = vst [vmem:[%s2 + $0x3f8] sm:$0xff] %v1421
  // Predicated region
  $region10: #{_lambda_.1} parent=0 // pred_check
    _
  $region11: #{_lambda_.1} parent=0 // pred_check_branch
    %1552 = sbr.rel (0) target = $region13
  $region12: #{_lambda_.1} parent=0 // pred_region
    _
  $region13: #{_lambda_.1} parent=0 // pred_fallthru
    _
  // Predicated region
  $region14: #{_lambda_.1} parent=0 // pred_check
    _
  $region15: #{_lambda_.1} parent=0 // pred_check_branch
    %1554 = sbr.rel (0) target = $region17
  $region16: #{_lambda_.1} parent=0 // pred_region
    _
  $region17: #{_lambda_.1} parent=0 // pred_fallthru
    _

</llo_original>
